<compile_context>
chip_gen: v6e
topology: v6e:2x2x1
jax: 0.10.0
libtpu: 0.0.40
codegen_flags: <defaults>
</compile_context>

<pallas_src>
import functools

import jax
import jax.numpy as jnp
from jax import lax
from jax.experimental import pallas as pl
from jax.experimental.pallas import tpu as pltpu


def _round_up(x, m):
    return ((x + m - 1) // m) * m


# ----------------------------------------------------------------------------
# Pallas kernels
# ----------------------------------------------------------------------------
def _deconv_kernel(x_ref, w_ref, b_ref, o_ref, *, activation):
    """One R-tile of a transposed conv as a single folded matmul.

    x_ref: (K_pad, TR)        im2col patches, lane-dense over R
    w_ref: (Cout_pad, K_pad)  flipped kernel, taps folded into contraction dim
    b_ref: (Cout_pad, 1)      bias
    o_ref: (Cout_pad, TR)     lane-dense output tile
    """
    acc = jnp.dot(w_ref[...], x_ref[...], preferred_element_type=jnp.float32)
    acc = acc + b_ref[...]
    if activation == "relu":
        acc = jnp.maximum(acc, 0.0)
    elif activation == "tanh":
        acc = jnp.tanh(acc)
    o_ref[...] = acc.astype(o_ref.dtype)


def _instance_norm_kernel(x_ref, g_ref, b_ref, o_ref, *, eps):
    """InstanceNorm2d: x_ref (N*C, H*W) lane-dense, g_ref/b_ref (N*C, 1)."""
    x = x_ref[...]
    mu = jnp.mean(x, axis=-1, keepdims=True)
    xc = x - mu
    var = jnp.mean(xc * xc, axis=-1, keepdims=True)          # biased variance
    o_ref[...] = (xc * lax.rsqrt(var + eps)) * g_ref[...] + b_ref[...]


# ----------------------------------------------------------------------------
# Layer wrappers (layout-only glue; compute is in the kernels above)
# ----------------------------------------------------------------------------
def conv_transpose2d(x_nchw, w, b, *, stride, padding, output_padding,
                     activation, r_tile=1024):
    """x_nchw: (N, Cin, H, W); w: (Cin, Cout, kH, kW) (PyTorch ConvTranspose2d)."""
    n, c_in, h, wd = x_nchw.shape
    _, c_out, kh, kw = w.shape
    s, p, op = stride, padding, output_padding

    # 1) zero-insertion for the stride (pure layout, plain JAX)
    if s > 1:
        z = jnp.zeros((n, c_in, h, s, wd, s), x_nchw.dtype)
        z = z.at[:, :, :, 0, :, 0].set(x_nchw)
        z = z.reshape(n, c_in, h * s, wd * s)[:, :, : (h - 1) * s + 1,
                                              : (wd - 1) * s + 1]
    else:
        z = x_nchw

    # 2) padding (output_padding goes on bottom/right)
    lo_h, hi_h = kh - 1 - p, kh - 1 - p + op
    lo_w, hi_w = kw - 1 - p, kw - 1 - p + op
    xp = jnp.pad(z, ((0, 0), (0, 0), (lo_h, hi_h), (lo_w, hi_w)))

    oh = (h - 1) * s - 2 * p + kh + op
    ow = (wd - 1) * s - 2 * p + kw + op
    r = n * oh * ow
    k_dim = kh * kw * c_in
    k_pad = _round_up(k_dim, 8)
    c_out_pad = _round_up(c_out, 8)

    # 3) flipped kernel with taps folded into the contraction dim: (Cout_pad, K_pad)
    wf = w[:, :, ::-1, ::-1]
    w2 = jnp.transpose(wf, (1, 2, 3, 0)).reshape(c_out, k_dim).astype(jnp.float32)
    w2 = jnp.pad(w2, ((0, c_out_pad - c_out), (0, k_pad - k_dim)))
    b2 = jnp.pad(b.reshape(c_out, 1).astype(jnp.float32),
                 ((0, c_out_pad - c_out), (0, 0)))

    # 4) im2col patch matrix (K, R): lane-dense over R, single contraction dim
    #    TODO(synk): polyphase decomposition (skip inserted zeros) / in-kernel shift
    #    generation would cut HBM bytes further; at these sizes the folded layout
    #    already keeps everything small, so the extra complexity is not taken.
    pats = [jnp.transpose(xp[:, :, i:i + oh, j:j + ow],
                          (1, 0, 2, 3)).reshape(c_in, r)
            for i in range(kh) for j in range(kw)]
    x2 = jnp.concatenate(pats, axis=0).astype(jnp.float32)       # (K, R)
    x2 = jnp.pad(x2, ((0, k_pad - k_dim), (0, 0)))

    # 5) pad R to a multiple of the lane tile and grid over R tiles
    tr = r_tile if r > r_tile else _round_up(r, 128)
    r_padded = _round_up(r, tr)
    if r_padded > r:
        x2 = jnp.pad(x2, ((0, 0), (0, r_padded - r)))
    n_tiles = r_padded // tr

    out = pl.pallas_call(
        functools.partial(_deconv_kernel, activation=activation),
        out_shape=jax.ShapeDtypeStruct((c_out_pad, r_padded), jnp.float32),
        grid=(n_tiles,),
        in_specs=[pl.BlockSpec((k_pad, tr), lambda i: (0, i)),
                  pl.BlockSpec((c_out_pad, k_pad), lambda i: (0, 0)),
                  pl.BlockSpec((c_out_pad, 1), lambda i: (0, 0))],
        out_specs=pl.BlockSpec((c_out_pad, tr), lambda i: (0, i)),
        compiler_params=pltpu.CompilerParams(
            dimension_semantics=("parallel",)),
    )(x2, w2, b2)

    out = out[:c_out, :r]                                        # strip padding
    return jnp.transpose(out.reshape(c_out, n, oh, ow), (1, 0, 2, 3))


def instance_norm2d(x_nchw, gamma, beta, *, eps):
    n, c, h, w = x_nchw.shape
    x2 = x_nchw.reshape(n * c, h * w).astype(jnp.float32)
    g2 = jnp.tile(gamma.reshape(1, c), (n, 1)).reshape(n * c, 1).astype(jnp.float32)
    b2 = jnp.tile(beta.reshape(1, c), (n, 1)).reshape(n * c, 1).astype(jnp.float32)
    out = pl.pallas_call(
        functools.partial(_instance_norm_kernel, eps=eps),
        out_shape=jax.ShapeDtypeStruct((n * c, h * w), jnp.float32),
        in_specs=[pl.BlockSpec(x2.shape, lambda: (0, 0)),
                  pl.BlockSpec((n * c, 1), lambda: (0, 0)),
                  pl.BlockSpec((n * c, 1), lambda: (0, 0))],
        out_specs=pl.BlockSpec((n * c, h * w), lambda: (0, 0)),
    )(x2, g2, b2)
    return out.reshape(n, c, h, w)


# ----------------------------------------------------------------------------
# OnionDecoder forward (NCHW in / NCHW out, matching the PyTorch module)
# ----------------------------------------------------------------------------
def onion_decoder(params, x_nchw):
    x = conv_transpose2d(x_nchw, params["w1"], params["b1"], stride=1, padding=0,
                         output_padding=0, activation="relu")
    x = conv_transpose2d(x, params["w2"], params["b2"], stride=2, padding=1,
                         output_padding=1, activation="relu")
    x = conv_transpose2d(x, params["w3"], params["b3"], stride=3, padding=1,
                         output_padding=0, activation="tanh")
    x = instance_norm2d(x, params["in_gamma"], params["in_beta"], eps=1.0)
    return x


def init_params(key):
    ks = jax.random.split(key, 6)
    return {
        "w1": jax.random.uniform(ks[0], (1, 8, 5, 5), jnp.float32, -0.2, 0.2),
        "b1": jax.random.uniform(ks[1], (8,), jnp.float32, -0.2, 0.2),
        "w2": jax.random.uniform(ks[2], (8, 16, 3, 3), jnp.float32, -0.2, 0.2),
        "b2": jax.random.uniform(ks[3], (16,), jnp.float32, -0.2, 0.2),
        "w3": jax.random.uniform(ks[4], (16, 1, 3, 3), jnp.float32, -0.2, 0.2),
        "b3": jax.random.uniform(ks[5], (1,), jnp.float32, -0.2, 0.2),
        "in_gamma": jnp.ones((1,), jnp.float32),    # InstanceNorm2d affine weight init
        "in_beta": jnp.zeros((1,), jnp.float32),    # InstanceNorm2d affine bias init
    }


# ----------------------------------------------------------------------------
# Pure-JAX reference (numerical self-check)
# ----------------------------------------------------------------------------
def _ref_conv_transpose(x_nhwc, w, b, stride, padding, output_padding):
    c_in, c_out, kh, kw = w.shape
    wf = jnp.transpose(w, (2, 3, 0, 1))[::-1, ::-1]               # HWIO, flipped
    lo = kh - 1 - padding
    hi = kh - 1 - padding + output_padding
    y = lax.conv_general_dilated(
        x_nhwc, wf, window_strides=(1, 1), padding=[(lo, hi), (lo, hi)],
        lhs_dilation=(stride, stride), dimension_numbers=("NHWC", "HWIO", "NHWC"))
    return y + b.reshape(1, 1, 1, c_out)


def onion_decoder_ref(params, x_nchw):
    x = jnp.transpose(x_nchw, (0, 2, 3, 1))
    x = jax.nn.relu(_ref_conv_transpose(x, params["w1"], params["b1"], 1, 0, 0))
    x = jax.nn.relu(_ref_conv_transpose(x, params["w2"], params["b2"], 2, 1, 1))
    x = jnp.tanh(_ref_conv_transpose(x, params["w3"], params["b3"], 3, 1, 0))
    mu = jnp.mean(x, axis=(1, 2), keepdims=True)
    var = jnp.mean((x - mu) ** 2, axis=(1, 2), keepdims=True)
    x = (x - mu) * lax.rsqrt(var + 1.0) * params["in_gamma"] + params["in_beta"]
    return jnp.transpose(x, (0, 3, 1, 2))


if __name__ == "__main__":
    key = jax.random.PRNGKey(0)
    pkey, xkey = jax.random.split(key)
    params = init_params(pkey)
    x = jax.random.normal(xkey, (2, 1, 6, 6), jnp.float32)   # NCHW, 1 input channel

    fwd = jax.jit(onion_decoder)
    y = jax.block_until_ready(fwd(params, x))
    # Spatial: 6 -> 10 (k5) -> 20 (k3,s2,p1,op1) -> 58 (k3,s3,p1)
    assert y.shape == (2, 1, 58, 58), y.shape

    y_ref = jax.block_until_ready(onion_decoder_ref(params, x))
    max_err = float(jnp.max(jnp.abs(y - y_ref)))
    assert max_err < 1e-3, f"mismatch vs reference: {max_err}"

    print("KERNEL_OK")
</pallas_src>

<mosaic_0001>
module attributes {stable_mosaic.version = 11 : i64} {
  func.func @_deconv_kernel(%arg0: i32, %arg1: memref<32x256xf32, #tpu.memory_space<vmem>>, %arg2: memref<8x32xf32, #tpu.memory_space<vmem>>, %arg3: memref<8x1xf32, #tpu.memory_space<vmem>>, %arg4: memref<8x256xf32, #tpu.memory_space<vmem>>) attributes {dimension_semantics = [#tpu.dimension_semantics<parallel>], iteration_bounds = array<i64: 1>, scalar_prefetch = 0 : i64, scratch_operands = 0 : i64, tpu.core_type = #tpu.core_type<tc>, window_params = [{transform_indices = @transform_0, window_bounds = array<i64: 32, 256>}, {pipeline_mode = #tpu.pipeline_mode<synchronous>, transform_indices = @transform_1, window_bounds = array<i64: 8, 32>}, {pipeline_mode = #tpu.pipeline_mode<synchronous>, transform_indices = @transform_2, window_bounds = array<i64: 8, 1>}, {transform_indices = @transform_3, window_bounds = array<i64: 8, 256>}]} {
    %c0 = arith.constant 0 : index
    %c0_0 = arith.constant 0 : index
    %0 = vector.load %arg2[%c0, %c0_0] : memref<8x32xf32, #tpu.memory_space<vmem>>, vector<8x32xf32>
    %c0_1 = arith.constant 0 : index
    %c0_2 = arith.constant 0 : index
    %1 = vector.load %arg1[%c0_1, %c0_2] : memref<32x256xf32, #tpu.memory_space<vmem>>, vector<32x256xf32>
    %cst = arith.constant dense<0.000000e+00> : vector<8x256xf32>
    %2 = tpu.matmul %0, %1, %cst {dimension_numbers = #tpu.dot_dimension_numbers<[1], [0], [0], [1], [0, 0, 1, 1], [], []>} : vector<8x32xf32>, vector<32x256xf32>, vector<8x256xf32> -> vector<8x256xf32>
    %c0_3 = arith.constant 0 : index
    %c0_4 = arith.constant 0 : index
    %3 = vector.load %arg3[%c0_3, %c0_4] : memref<8x1xf32, #tpu.memory_space<vmem>>, vector<8x1xf32>
    %4 = vector.broadcast %3 : vector<8x1xf32> to vector<8x256xf32>
    %5 = arith.addf %2, %4 : vector<8x256xf32>
    %cst_5 = arith.constant 0.000000e+00 : f32
    %6 = vector.broadcast %cst_5 : f32 to vector<8x256xf32>
    %7 = arith.maximumf %5, %6 : vector<8x256xf32>
    %c0_6 = arith.constant 0 : index
    %c0_7 = arith.constant 0 : index
    %8 = vector.load %arg4[%c0_6, %c0_7] : memref<8x256xf32, #tpu.memory_space<vmem>>, vector<8x256xf32>
    tpu.vector_store %arg4[%c0_6, %c0_7], %7 {strides = array<i32>} : memref<8x256xf32, #tpu.memory_space<vmem>>, vector<8x256xf32>,
    return
  }
  func.func @transform_0(%arg0: i32) -> (i32, i32) {
    %c0_i32 = arith.constant 0 : i32
    %c0_i32_0 = arith.constant 0 : i32
    return %c0_i32, %arg0 : i32, i32
  }
  func.func @transform_1(%arg0: i32) -> (i32, i32) {
    %c0_i32 = arith.constant 0 : i32
    %c0_i32_0 = arith.constant 0 : i32
    %c0_i32_1 = arith.constant 0 : i32
    return %c0_i32, %c0_i32_0 : i32, i32
  }
  func.func @transform_2(%arg0: i32) -> (i32, i32) {
    %c0_i32 = arith.constant 0 : i32
    %c0_i32_0 = arith.constant 0 : i32
    %c0_i32_1 = arith.constant 0 : i32
    return %c0_i32, %c0_i32_0 : i32, i32
  }
  func.func @transform_3(%arg0: i32) -> (i32, i32) {
    %c0_i32 = arith.constant 0 : i32
    %c0_i32_0 = arith.constant 0 : i32
    return %c0_i32, %arg0 : i32, i32
  }
}

module attributes {stable_mosaic.version = 11 : i64} {
  func.func @_deconv_kernel(%arg0: i32, %arg1: memref<72x896xf32, #tpu.memory_space<vmem>>, %arg2: memref<16x72xf32, #tpu.memory_space<vmem>>, %arg3: memref<16x1xf32, #tpu.memory_space<vmem>>, %arg4: memref<16x896xf32, #tpu.memory_space<vmem>>) attributes {dimension_semantics = [#tpu.dimension_semantics<parallel>], iteration_bounds = array<i64: 1>, scalar_prefetch = 0 : i64, scratch_operands = 0 : i64, tpu.core_type = #tpu.core_type<tc>, window_params = [{transform_indices = @transform_0, window_bounds = array<i64: 72, 896>}, {pipeline_mode = #tpu.pipeline_mode<synchronous>, transform_indices = @transform_1, window_bounds = array<i64: 16, 72>}, {pipeline_mode = #tpu.pipeline_mode<synchronous>, transform_indices = @transform_2, window_bounds = array<i64: 16, 1>}, {transform_indices = @transform_3, window_bounds = array<i64: 16, 896>}]} {
    %c0 = arith.constant 0 : index
    %c0_0 = arith.constant 0 : index
    %0 = vector.load %arg2[%c0, %c0_0] : memref<16x72xf32, #tpu.memory_space<vmem>>, vector<16x72xf32>
    %c0_1 = arith.constant 0 : index
    %c0_2 = arith.constant 0 : index
    %1 = vector.load %arg1[%c0_1, %c0_2] : memref<72x896xf32, #tpu.memory_space<vmem>>, vector<72x896xf32>
    %cst = arith.constant dense<0.000000e+00> : vector<16x896xf32>
    %2 = tpu.matmul %0, %1, %cst {dimension_numbers = #tpu.dot_dimension_numbers<[1], [0], [0], [1], [0, 0, 1, 1], [], []>} : vector<16x72xf32>, vector<72x896xf32>, vector<16x896xf32> -> vector<16x896xf32>
    %c0_3 = arith.constant 0 : index
    %c0_4 = arith.constant 0 : index
    %3 = vector.load %arg3[%c0_3, %c0_4] : memref<16x1xf32, #tpu.memory_space<vmem>>, vector<16x1xf32>
    %4 = vector.broadcast %3 : vector<16x1xf32> to vector<16x896xf32>
    %5 = arith.addf %2, %4 : vector<16x896xf32>
    %cst_5 = arith.constant 0.000000e+00 : f32
    %6 = vector.broadcast %cst_5 : f32 to vector<16x896xf32>
    %7 = arith.maximumf %5, %6 : vector<16x896xf32>
    %c0_6 = arith.constant 0 : index
    %c0_7 = arith.constant 0 : index
    %8 = vector.load %arg4[%c0_6, %c0_7] : memref<16x896xf32, #tpu.memory_space<vmem>>, vector<16x896xf32>
    tpu.vector_store %arg4[%c0_6, %c0_7], %7 {strides = array<i32>} : memref<16x896xf32, #tpu.memory_space<vmem>>, vector<16x896xf32>,
    return
  }
  func.func @transform_0(%arg0: i32) -> (i32, i32) {
    %c0_i32 = arith.constant 0 : i32
    %c0_i32_0 = arith.constant 0 : i32
    return %c0_i32, %arg0 : i32, i32
  }
  func.func @transform_1(%arg0: i32) -> (i32, i32) {
    %c0_i32 = arith.constant 0 : i32
    %c0_i32_0 = arith.constant 0 : i32
    %c0_i32_1 = arith.constant 0 : i32
    return %c0_i32, %c0_i32_0 : i32, i32
  }
  func.func @transform_2(%arg0: i32) -> (i32, i32) {
    %c0_i32 = arith.constant 0 : i32
    %c0_i32_0 = arith.constant 0 : i32
    %c0_i32_1 = arith.constant 0 : i32
    return %c0_i32, %c0_i32_0 : i32, i32
  }
  func.func @transform_3(%arg0: i32) -> (i32, i32) {
    %c0_i32 = arith.constant 0 : i32
    %c0_i32_0 = arith.constant 0 : i32
    return %c0_i32, %arg0 : i32, i32
  }
}

module attributes {stable_mosaic.version = 11 : i64} {
  func.func @_deconv_kernel(%arg0: i32, %arg1: memref<144x1024xf32, #tpu.memory_space<vmem>>, %arg2: memref<8x144xf32, #tpu.memory_space<vmem>>, %arg3: memref<8x1xf32, #tpu.memory_space<vmem>>, %arg4: memref<8x1024xf32, #tpu.memory_space<vmem>>) attributes {dimension_semantics = [#tpu.dimension_semantics<parallel>], iteration_bounds = array<i64: 7>, scalar_prefetch = 0 : i64, scratch_operands = 0 : i64, tpu.core_type = #tpu.core_type<tc>, window_params = [{transform_indices = @transform_0, window_bounds = array<i64: 144, 1024>}, {pipeline_mode = #tpu.pipeline_mode<synchronous>, transform_indices = @transform_1, window_bounds = array<i64: 8, 144>}, {pipeline_mode = #tpu.pipeline_mode<synchronous>, transform_indices = @transform_2, window_bounds = array<i64: 8, 1>}, {transform_indices = @transform_3, window_bounds = array<i64: 8, 1024>}]} {
    %c0 = arith.constant 0 : index
    %c0_0 = arith.constant 0 : index
    %0 = vector.load %arg2[%c0, %c0_0] : memref<8x144xf32, #tpu.memory_space<vmem>>, vector<8x144xf32>
    %c0_1 = arith.constant 0 : index
    %c0_2 = arith.constant 0 : index
    %1 = vector.load %arg1[%c0_1, %c0_2] : memref<144x1024xf32, #tpu.memory_space<vmem>>, vector<144x1024xf32>
    %cst = arith.constant dense<0.000000e+00> : vector<8x1024xf32>
    %2 = tpu.matmul %0, %1, %cst {dimension_numbers = #tpu.dot_dimension_numbers<[1], [0], [0], [1], [0, 0, 1, 1], [], []>} : vector<8x144xf32>, vector<144x1024xf32>, vector<8x1024xf32> -> vector<8x1024xf32>
    %c0_3 = arith.constant 0 : index
    %c0_4 = arith.constant 0 : index
    %3 = vector.load %arg3[%c0_3, %c0_4] : memref<8x1xf32, #tpu.memory_space<vmem>>, vector<8x1xf32>
    %4 = vector.broadcast %3 : vector<8x1xf32> to vector<8x1024xf32>
    %5 = arith.addf %2, %4 : vector<8x1024xf32>
    %6 = math.tanh %5 : vector<8x1024xf32>
    %c0_5 = arith.constant 0 : index
    %c0_6 = arith.constant 0 : index
    %7 = vector.load %arg4[%c0_5, %c0_6] : memref<8x1024xf32, #tpu.memory_space<vmem>>, vector<8x1024xf32>
    tpu.vector_store %arg4[%c0_5, %c0_6], %6 {strides = array<i32>} : memref<8x1024xf32, #tpu.memory_space<vmem>>, vector<8x1024xf32>,
    return
  }
  func.func @transform_0(%arg0: i32) -> (i32, i32) {
    %c0_i32 = arith.constant 0 : i32
    %c0_i32_0 = arith.constant 0 : i32
    return %c0_i32, %arg0 : i32, i32
  }
  func.func @transform_1(%arg0: i32) -> (i32, i32) {
    %c0_i32 = arith.constant 0 : i32
    %c0_i32_0 = arith.constant 0 : i32
    %c0_i32_1 = arith.constant 0 : i32
    return %c0_i32, %c0_i32_0 : i32, i32
  }
  func.func @transform_2(%arg0: i32) -> (i32, i32) {
    %c0_i32 = arith.constant 0 : i32
    %c0_i32_0 = arith.constant 0 : i32
    %c0_i32_1 = arith.constant 0 : i32
    return %c0_i32, %c0_i32_0 : i32, i32
  }
  func.func @transform_3(%arg0: i32) -> (i32, i32) {
    %c0_i32 = arith.constant 0 : i32
    %c0_i32_0 = arith.constant 0 : i32
    return %c0_i32, %arg0 : i32, i32
  }
}

module attributes {stable_mosaic.version = 11 : i64} {
  func.func @_instance_norm_kernel(%arg0: memref<2x3364xf32, #tpu.memory_space<vmem>>, %arg1: memref<2x1xf32, #tpu.memory_space<vmem>>, %arg2: memref<2x1xf32, #tpu.memory_space<vmem>>, %arg3: memref<2x3364xf32, #tpu.memory_space<vmem>>) attributes {dimension_semantics = [], scalar_prefetch = 0 : i64, scratch_operands = 0 : i64, tpu.core_type = #tpu.core_type<tc>} {
    %c0 = arith.constant 0 : index
    %c0_0 = arith.constant 0 : index
    %0 = vector.load %arg0[%c0, %c0_0] : memref<2x3364xf32, #tpu.memory_space<vmem>>, vector<2x3364xf32>
    %cst = arith.constant dense<0.000000e+00> : vector<2xf32>
    %1 = vector.multi_reduction <add>, %0, %cst [1] : vector<2x3364xf32> to vector<2xf32>
    %2 = vector.shape_cast %1 : vector<2xf32> to vector<2x1xf32>
    %cst_1 = arith.constant 3.364000e+03 : f32
    %3 = vector.broadcast %cst_1 : f32 to vector<2x1xf32>
    %4 = arith.divf %2, %3 : vector<2x1xf32>
    %5 = vector.broadcast %4 : vector<2x1xf32> to vector<2x3364xf32>
    %6 = arith.subf %0, %5 : vector<2x3364xf32>
    %7 = arith.mulf %6, %6 : vector<2x3364xf32>
    %cst_2 = arith.constant dense<0.000000e+00> : vector<2xf32>
    %8 = vector.multi_reduction <add>, %7, %cst_2 [1] : vector<2x3364xf32> to vector<2xf32>
    %9 = vector.shape_cast %8 : vector<2xf32> to vector<2x1xf32>
    %cst_3 = arith.constant 3.364000e+03 : f32
    %10 = vector.broadcast %cst_3 : f32 to vector<2x1xf32>
    %11 = arith.divf %9, %10 : vector<2x1xf32>
    %cst_4 = arith.constant 1.000000e+00 : f32
    %12 = vector.broadcast %cst_4 : f32 to vector<2x1xf32>
    %13 = arith.addf %11, %12 : vector<2x1xf32>
    %14 = math.rsqrt %13 : vector<2x1xf32>
    %15 = vector.broadcast %14 : vector<2x1xf32> to vector<2x3364xf32>
    %16 = arith.mulf %6, %15 : vector<2x3364xf32>
    %c0_5 = arith.constant 0 : index
    %c0_6 = arith.constant 0 : index
    %17 = vector.load %arg1[%c0_5, %c0_6] : memref<2x1xf32, #tpu.memory_space<vmem>>, vector<2x1xf32>
    %18 = vector.broadcast %17 : vector<2x1xf32> to vector<2x3364xf32>
    %19 = arith.mulf %16, %18 : vector<2x3364xf32>
    %c0_7 = arith.constant 0 : index
    %c0_8 = arith.constant 0 : index
    %20 = vector.load %arg2[%c0_7, %c0_8] : memref<2x1xf32, #tpu.memory_space<vmem>>, vector<2x1xf32>
    %21 = vector.broadcast %20 : vector<2x1xf32> to vector<2x3364xf32>
    %22 = arith.addf %19, %21 : vector<2x3364xf32>
    %c0_9 = arith.constant 0 : index
    %c0_10 = arith.constant 0 : index
    %23 = vector.load %arg3[%c0_9, %c0_10] : memref<2x3364xf32, #tpu.memory_space<vmem>>, vector<2x3364xf32>
    tpu.vector_store %arg3[%c0_9, %c0_10], %22 {strides = array<i32>} : memref<2x3364xf32, #tpu.memory_space<vmem>>, vector<2x3364xf32>,
    return
  }
}

</mosaic_0001>

<llo_original>
// kernel: onion_decoder.4
$region0: #{onion_decoder.4}
  #allocation0 [shape = 'u32[]', space=smem, size = 0x4, offset = 0x4, fixed_abs, tag = 'smem constant byte address 0x4 - core index']
  #allocation1 [shape = 'u32[144,128]{1,0:T(1,128)}', space=vmem, size = 0x12000, scoped, tag = 'internal scratch']
  %s0 = inlined_call_operand.vmem [shape: f32[32,256], index: 0, kind: input, shape index: {}]
  %s1 = inlined_call_operand.vmem [shape: f32[8,32], index: 1, kind: input, shape index: {}]
  %s2 = inlined_call_operand.vmem [shape: f32[8,1], index: 2, kind: input, shape index: {}]
  %s3 = inlined_call_operand.vmem [shape: f32[8,256], index: 3, kind: output, shape index: {}]
  %s4 = sld [smem:[#allocation0]]
  $region22: #{onion_decoder.4} parent=0
    _
  %s6 = ssub.s32 1, %s4
  %s7 = scalar_select 0, %s6, %s4
  // Predicated region
  $region2: #{onion_decoder.4} parent=0 // pred_check
    _
  $region3: #{onion_decoder.4} parent=0 // pred_check_branch
    %9 = sbr.rel (0) target = $region5
  $region4: #{onion_decoder.4} parent=0 // pred_region
    _
  $region5: #{onion_decoder.4} parent=0 // pred_fallthru
    _
  // Predicated region
  $region6: #{onion_decoder.4} parent=0 // pred_check
    _
  $region7: #{onion_decoder.4} parent=0 // pred_check_branch
    %11 = sbr.rel (0) target = $region9
  $region8: #{onion_decoder.4} parent=0 // pred_region
    _
  $region9: #{onion_decoder.4} parent=0 // pred_fallthru
    _
  // Predicated region
  $region10: #{onion_decoder.4} parent=0 // pred_check
    _
  $region11: #{onion_decoder.4} parent=0 // pred_check_branch
    %13 = sbr.rel (0) target = $region13
  $region12: #{onion_decoder.4} parent=0 // pred_region
    _
  $region13: #{onion_decoder.4} parent=0 // pred_fallthru
    _
  %v14 = vld [vmem:[%s1] sm:$0xff]
  %v15 = vld [vmem:[%s0] sm:$0xff]
  %v16 = vld [vmem:[%s0 + $0x8] sm:$0xff]
  %v17 = vld [vmem:[%s0 + $0x10] sm:$0xff]
  %v18 = vld [vmem:[%s0 + $0x18] sm:$0xff]
  %v19 = vld [vmem:[%s0 + $0x20] sm:$0xff]
  %v20 = vld [vmem:[%s0 + $0x28] sm:$0xff]
  %v21 = vld [vmem:[%s0 + $0x30] sm:$0xff]
  %v22 = vld [vmem:[%s0 + $0x38] sm:$0xff]
  %v23 = vld [vmem:[%s2] sm:$0xff]
  %25 = vset.pattern.permute.xlu0 0
  %26 = vperm.xlu0 %25, %v23
  %v27 = vpop.permute.xlu0 %26
  %vm29 = vcmask 261120
  %v31 = vsel %vm29, %v14, 0
  %33 = vmatprep.subr.mxu0 0.0
  %34 = vmatpush1.msra.mxu0 0.0
  %35 = vmatprep.subr.mxu0 0.0
  %36 = vmatpush1.msra.mxu0 0.0
  %37 = vmatprep.subr.mxu0 0.0
  %38 = vmatpush1.msra.mxu0 0.0
  %39 = vmatprep.subr.mxu0 0.0
  %40 = vmatpush1.msra.mxu0 0.0
  %41 = vmatprep.subr.mxu0 0.0
  %42 = vmatpush1.msra.mxu0 0.0
  %43 = vmatprep.subr.mxu0 0.0
  %44 = vmatpush1.msra.mxu0 0.0
  %45 = vmatprep.subr.mxu0 0.0
  %46 = vmatpush1.msra.mxu0 0.0
  %47 = vmatprep.subr.mxu0 0.0
  %48 = vmatpush1.msra.mxu0 0.0
  %49 = vmatprep.subr.mxu0 0.0
  %50 = vmatpush1.msra.mxu0 0.0
  %51 = vmatprep.subr.mxu0 0.0
  %52 = vmatpush1.msra.mxu0 0.0
  %53 = vmatprep.subr.mxu0 0.0
  %54 = vmatpush1.msra.mxu0 0.0
  %55 = vmatprep.subr.mxu0 0.0
  %56 = vmatpush1.msra.mxu0 0.0
  %57 = vmatprep.subr.mxu0 %v22
  %58 = vmatpush1.msra.mxu0 %v21
  %59 = vmatprep.subr.mxu0 %v20
  %60 = vmatpush1.msra.mxu0 %v19
  %61 = vmatprep.subr.mxu0 %v18
  %62 = vmatpush1.msra.mxu0 %v17
  %63 = vmatprep.subr.mxu0 %v16
  %64 = vmatpush1.msra.mxu0 %v15
  %65 = vmatprep.subr.mxu0 0.0
  %66 = vmatpush2.msra.mxu0 0.0
  %67 = vmatprep.subr.mxu0 0.0
  %68 = vmatpush2.msra.mxu0 0.0
  %69 = vmatprep.subr.mxu0 0.0
  %70 = vmatpush2.msra.mxu0 0.0
  %71 = vmatprep.subr.mxu0 0.0
  %72 = vmatpush2.msra.mxu0 0.0
  %73 = vmatprep.subr.mxu0 0.0
  %74 = vmatpush2.msra.mxu0 0.0
  %75 = vmatprep.subr.mxu0 0.0
  %76 = vmatpush2.msra.mxu0 0.0
  %77 = vmatprep.subr.mxu0 0.0
  %78 = vmatpush2.msra.mxu0 0.0
  %79 = vmatprep.subr.mxu0 0.0
  %80 = vmatpush2.msra.mxu0 0.0
  %81 = vmatprep.subr.mxu0 0.0
  %82 = vmatpush2.msra.mxu0 0.0
  %83 = vmatprep.subr.mxu0 0.0
  %84 = vmatpush2.msra.mxu0 0.0
  %85 = vmatprep.subr.mxu0 0.0
  %86 = vmatpush2.msra.mxu0 0.0
  %87 = vmatprep.subr.mxu0 0.0
  %88 = vmatpush2.msra.mxu0 0.0
  %89 = vmatprep.subr.mxu0 0.0
  %90 = vmatpush2.msra.mxu0 0.0
  %91 = vmatprep.subr.mxu0 0.0
  %92 = vmatpush2.msra.mxu0 0.0
  %93 = vmatprep.subr.mxu0 0.0
  %94 = vmatpush2.msra.mxu0 0.0
  %95 = vmatprep.subr.mxu0 0.0
  %96 = vmatpush2.msra.mxu0 0.0
  %97 = vmatprep.mubr.f32.mxu0 0.0
  %98 = vmatmul.mubr.f32.gmra.mxu0 %v31
  %v99 = vpop.f32.mrf.mxu0
  %v100 = vadd.f32 %v27, %v99
  %v101 = vpop.f32.mrf.mxu0
  %v102 = vadd.f32 %v27, %v101
  %103 = vdwg.mxu0
  %v104 = vmax.f32 %v100, 0.0
  %v105 = vmax.f32 %v102, 0.0
  %106 = vst [vmem:[%s3] sm:$0xff] %v104
  %107 = vst [vmem:[%s3 + $0x8] sm:$0xff] %v105
  // Predicated region
  $region14: #{onion_decoder.4} parent=0 // pred_check
    _
  $region15: #{onion_decoder.4} parent=0 // pred_check_branch
    %109 = sbr.rel (0) target = $region17
  $region16: #{onion_decoder.4} parent=0 // pred_region
    _
  $region17: #{onion_decoder.4} parent=0 // pred_fallthru
    _
  // Predicated region
  $region18: #{onion_decoder.4} parent=0 // pred_check
    _
  $region19: #{onion_decoder.4} parent=0 // pred_check_branch
    %111 = sbr.rel (0) target = $region21
  $region20: #{onion_decoder.4} parent=0 // pred_region
    _
  $region21: #{onion_decoder.4} parent=0 // pred_fallthru
    _

// kernel: onion_decoder.5
$region0: #{onion_decoder.5}
  #allocation0 [shape = 'u32[]', space=smem, size = 0x4, offset = 0x4, fixed_abs, tag = 'smem constant byte address 0x4 - core index']
  #allocation1 [shape = 'u32[144,128]{1,0:T(1,128)}', space=vmem, size = 0x12000, scoped, tag = 'internal scratch']
  %s0 = inlined_call_operand.vmem [shape: f32[72,896], index: 0, kind: input, shape index: {}]
  %s1 = inlined_call_operand.vmem [shape: f32[16,72], index: 1, kind: input, shape index: {}]
  %s2 = inlined_call_operand.vmem [shape: f32[16,1], index: 2, kind: input, shape index: {}]
  %s3 = inlined_call_operand.vmem [shape: f32[16,896], index: 3, kind: output, shape index: {}]
  %s4 = sld [smem:[#allocation0]]
  $region22: #{onion_decoder.5} parent=0
    _
  %s6 = ssub.s32 1, %s4
  %s7 = scalar_select 0, %s6, %s4
  // Predicated region
  $region2: #{onion_decoder.5} parent=0 // pred_check
    _
  $region3: #{onion_decoder.5} parent=0 // pred_check_branch
    %9 = sbr.rel (0) target = $region5
  $region4: #{onion_decoder.5} parent=0 // pred_region
    _
  $region5: #{onion_decoder.5} parent=0 // pred_fallthru
    _
  // Predicated region
  $region6: #{onion_decoder.5} parent=0 // pred_check
    _
  $region7: #{onion_decoder.5} parent=0 // pred_check_branch
    %11 = sbr.rel (0) target = $region9
  $region8: #{onion_decoder.5} parent=0 // pred_region
    _
  $region9: #{onion_decoder.5} parent=0 // pred_fallthru
    _
  // Predicated region
  $region10: #{onion_decoder.5} parent=0 // pred_check
    _
  $region11: #{onion_decoder.5} parent=0 // pred_check_branch
    %13 = sbr.rel (0) target = $region13
  $region12: #{onion_decoder.5} parent=0 // pred_region
    _
  $region13: #{onion_decoder.5} parent=0 // pred_fallthru
    _
  %v14 = vld [vmem:[%s1] sm:$0xff]
  %v15 = vld [vmem:[%s1 + $0x8] sm:$0xff]
  %v16 = vld [vmem:[%s0] sm:$0xff]
  %v17 = vld [vmem:[%s0 + $0x8] sm:$0xff]
  %v18 = vld [vmem:[%s0 + $0x10] sm:$0xff]
  %v19 = vld [vmem:[%s0 + $0x18] sm:$0xff]
  %v20 = vld [vmem:[%s0 + $0x20] sm:$0xff]
  %v21 = vld [vmem:[%s0 + $0x28] sm:$0xff]
  %v22 = vld [vmem:[%s0 + $0x30] sm:$0xff]
  %v23 = vld [vmem:[%s0 + $0x38] sm:$0xff]
  %v24 = vld [vmem:[%s0 + $0x40] sm:$0xff]
  %v25 = vld [vmem:[%s0 + $0x48] sm:$0xff]
  %v26 = vld [vmem:[%s0 + $0x50] sm:$0xff]
  %v27 = vld [vmem:[%s0 + $0x58] sm:$0xff]
  %v28 = vld [vmem:[%s0 + $0x60] sm:$0xff]
  %v29 = vld [vmem:[%s0 + $0x68] sm:$0xff]
  %v30 = vld [vmem:[%s0 + $0x70] sm:$0xff]
  %v31 = vld [vmem:[%s0 + $0x78] sm:$0xff]
  %v32 = vld [vmem:[%s0 + $0x80] sm:$0xff]
  %v33 = vld [vmem:[%s0 + $0x88] sm:$0xff]
  %v34 = vld [vmem:[%s0 + $0x90] sm:$0xff]
  %v35 = vld [vmem:[%s0 + $0x98] sm:$0xff]
  %v36 = vld [vmem:[%s0 + $0xa0] sm:$0xff]
  %v37 = vld [vmem:[%s0 + $0xa8] sm:$0xff]
  %v38 = vld [vmem:[%s0 + $0xb0] sm:$0xff]
  %v39 = vld [vmem:[%s0 + $0xb8] sm:$0xff]
  %v40 = vld [vmem:[%s0 + $0xc0] sm:$0xff]
  %v41 = vld [vmem:[%s0 + $0xc8] sm:$0xff]
  %v42 = vld [vmem:[%s0 + $0xd0] sm:$0xff]
  %v43 = vld [vmem:[%s0 + $0xd8] sm:$0xff]
  %v44 = vld [vmem:[%s0 + $0xe0] sm:$0xff]
  %v45 = vld [vmem:[%s0 + $0xe8] sm:$0xff]
  %v46 = vld [vmem:[%s0 + $0xf0] sm:$0xff]
  %v47 = vld [vmem:[%s0 + $0xf8] sm:$0xff]
  %v48 = vld [vmem:[%s0 + $0x100] sm:$0xff]
  %v49 = vld [vmem:[%s0 + $0x108] sm:$0xff]
  %v50 = vld [vmem:[%s0 + $0x110] sm:$0xff]
  %v51 = vld [vmem:[%s0 + $0x118] sm:$0xff]
  %v52 = vld [vmem:[%s0 + $0x120] sm:$0xff]
  %v53 = vld [vmem:[%s0 + $0x128] sm:$0xff]
  %v54 = vld [vmem:[%s0 + $0x130] sm:$0xff]
  %v55 = vld [vmem:[%s0 + $0x138] sm:$0xff]
  %v56 = vld [vmem:[%s0 + $0x140] sm:$0xff]
  %v57 = vld [vmem:[%s0 + $0x148] sm:$0xff]
  %v58 = vld [vmem:[%s0 + $0x150] sm:$0xff]
  %v59 = vld [vmem:[%s0 + $0x158] sm:$0xff]
  %v60 = vld [vmem:[%s0 + $0x160] sm:$0xff]
  %v61 = vld [vmem:[%s0 + $0x168] sm:$0xff]
  %v62 = vld [vmem:[%s0 + $0x170] sm:$0xff]
  %v63 = vld [vmem:[%s0 + $0x178] sm:$0xff]
  %v64 = vld [vmem:[%s0 + $0x180] sm:$0xff]
  %v65 = vld [vmem:[%s0 + $0x188] sm:$0xff]
  %v66 = vld [vmem:[%s0 + $0x190] sm:$0xff]
  %v67 = vld [vmem:[%s0 + $0x198] sm:$0xff]
  %v68 = vld [vmem:[%s0 + $0x1a0] sm:$0xff]
  %v69 = vld [vmem:[%s0 + $0x1a8] sm:$0xff]
  %v70 = vld [vmem:[%s0 + $0x1b0] sm:$0xff]
  %v71 = vld [vmem:[%s0 + $0x1b8] sm:$0xff]
  %v72 = vld [vmem:[%s0 + $0x1c0] sm:$0xff]
  %v73 = vld [vmem:[%s0 + $0x1c8] sm:$0xff]
  %v74 = vld [vmem:[%s0 + $0x1d0] sm:$0xff]
  %v75 = vld [vmem:[%s0 + $0x1d8] sm:$0xff]
  %v76 = vld [vmem:[%s0 + $0x1e0] sm:$0xff]
  %v77 = vld [vmem:[%s0 + $0x1e8] sm:$0xff]
  %v78 = vld [vmem:[%s0 + $0x1f0] sm:$0xff]
  %v79 = vld [vmem:[%s2] sm:$0xff]
  %v80 = vld [vmem:[%s2 + $0x8] sm:$0xff]
  %82 = vset.pattern.permute.xlu0 0
  %83 = vperm.xlu0 %82, %v79
  %v84 = vpop.permute.xlu0 %83
  %87 = vset.pattern.permute.xlu0 0
  %88 = vperm.xlu0 %87, %v80
  %v89 = vpop.permute.xlu0 %88
  %vm91 = vcmask 588800
  %v93 = vsel %vm91, %v14, 0
  %v96 = vsel %vm91, %v15, 0
  %98 = vmatprep.subr.mxu0 0.0
  %99 = vmatpush1.msra.mxu0 0.0
  %100 = vmatprep.subr.mxu0 0.0
  %101 = vmatpush1.msra.mxu0 0.0
  %102 = vmatprep.subr.mxu0 0.0
  %103 = vmatpush1.msra.mxu0 0.0
  %104 = vmatprep.subr.mxu0 0.0
  %105 = vmatpush1.msra.mxu0 0.0
  %106 = vmatprep.subr.mxu0 0.0
  %107 = vmatpush1.msra.mxu0 0.0
  %108 = vmatprep.subr.mxu0 0.0
  %109 = vmatpush1.msra.mxu0 0.0
  %110 = vmatprep.subr.mxu0 0.0
  %111 = vmatpush1.msra.mxu0 0.0
  %112 = vmatprep.subr.mxu0 %v73
  %113 = vmatpush1.msra.mxu0 %v72
  %114 = vmatprep.subr.mxu0 %v66
  %115 = vmatpush1.msra.mxu0 %v65
  %116 = vmatprep.subr.mxu0 %v59
  %117 = vmatpush1.msra.mxu0 %v58
  %118 = vmatprep.subr.mxu0 %v52
  %119 = vmatpush1.msra.mxu0 %v51
  %120 = vmatprep.subr.mxu0 %v45
  %121 = vmatpush1.msra.mxu0 %v44
  %122 = vmatprep.subr.mxu0 %v38
  %123 = vmatpush1.msra.mxu0 %v37
  %124 = vmatprep.subr.mxu0 %v31
  %125 = vmatpush1.msra.mxu0 %v30
  %126 = vmatprep.subr.mxu0 %v24
  %127 = vmatpush1.msra.mxu0 %v23
  %128 = vmatprep.subr.mxu0 %v17
  %129 = vmatpush1.msra.mxu0 %v16
  %130 = vmatprep.subr.mxu0 0.0
  %131 = vmatpush2.msra.mxu0 0.0
  %132 = vmatprep.subr.mxu0 0.0
  %133 = vmatpush2.msra.mxu0 0.0
  %134 = vmatprep.subr.mxu0 0.0
  %135 = vmatpush2.msra.mxu0 0.0
  %136 = vmatprep.subr.mxu0 0.0
  %137 = vmatpush2.msra.mxu0 0.0
  %138 = vmatprep.subr.mxu0 0.0
  %139 = vmatpush2.msra.mxu0 0.0
  %140 = vmatprep.subr.mxu0 0.0
  %141 = vmatpush2.msra.mxu0 0.0
  %142 = vmatprep.subr.mxu0 0.0
  %143 = vmatpush2.msra.mxu0 0.0
  %144 = vmatprep.subr.mxu0 0.0
  %145 = vmatpush2.msra.mxu0 0.0
  %146 = vmatprep.subr.mxu0 0.0
  %147 = vmatpush2.msra.mxu0 0.0
  %148 = vmatprep.subr.mxu0 0.0
  %149 = vmatpush2.msra.mxu0 0.0
  %150 = vmatprep.subr.mxu0 0.0
  %151 = vmatpush2.msra.mxu0 0.0
  %152 = vmatprep.subr.mxu0 0.0
  %153 = vmatpush2.msra.mxu0 0.0
  %154 = vmatprep.subr.mxu0 0.0
  %155 = vmatpush2.msra.mxu0 0.0
  %156 = vmatprep.subr.mxu0 0.0
  %157 = vmatpush2.msra.mxu0 0.0
  %158 = vmatprep.subr.mxu0 0.0
  %159 = vmatpush2.msra.mxu0 0.0
  %160 = vmatprep.subr.mxu0 0.0
  %161 = vmatpush2.msra.mxu0 0.0
  %162 = vmatprep.mubr.f32.mxu0 0.0
  %163 = vmatmul.mubr.f32.gmra.mxu0 %v93
  %v164 = vpop.f32.mrf.mxu0
  %v165 = vadd.f32 %v84, %v164
  %v166 = vpop.f32.mrf.mxu0
  %v167 = vadd.f32 %v84, %v166
  %168 = vmatprep.mubr.f32.mxu0 0.0
  %169 = vmatmul.mubr.f32.gmra.mxu0 %v96
  %v170 = vpop.f32.mrf.mxu0
  %v171 = vadd.f32 %v89, %v170
  %v172 = vpop.f32.mrf.mxu0
  %v173 = vadd.f32 %v89, %v172
  %174 = vdwg.mxu0
  %175 = vmatprep.subr.mxu0 0.0
  %176 = vmatpush1.msra.mxu0 0.0
  %177 = vmatprep.subr.mxu0 0.0
  %178 = vmatpush1.msra.mxu0 0.0
  %179 = vmatprep.subr.mxu0 0.0
  %180 = vmatpush1.msra.mxu0 0.0
  %181 = vmatprep.subr.mxu0 0.0
  %182 = vmatpush1.msra.mxu0 0.0
  %183 = vmatprep.subr.mxu0 0.0
  %184 = vmatpush1.msra.mxu0 0.0
  %185 = vmatprep.subr.mxu0 0.0
  %186 = vmatpush1.msra.mxu0 0.0
  %187 = vmatprep.subr.mxu0 0.0
  %188 = vmatpush1.msra.mxu0 0.0
  %189 = vmatprep.subr.mxu0 %v75
  %190 = vmatpush1.msra.mxu0 %v74
  %191 = vmatprep.subr.mxu0 %v68
  %192 = vmatpush1.msra.mxu0 %v67
  %193 = vmatprep.subr.mxu0 %v61
  %194 = vmatpush1.msra.mxu0 %v60
  %195 = vmatprep.subr.mxu0 %v54
  %196 = vmatpush1.msra.mxu0 %v53
  %197 = vmatprep.subr.mxu0 %v47
  %198 = vmatpush1.msra.mxu0 %v46
  %199 = vmatprep.subr.mxu0 %v40
  %200 = vmatpush1.msra.mxu0 %v39
  %201 = vmatprep.subr.mxu0 %v33
  %202 = vmatpush1.msra.mxu0 %v32
  %203 = vmatprep.subr.mxu0 %v26
  %204 = vmatpush1.msra.mxu0 %v25
  %205 = vmatprep.subr.mxu0 %v19
  %206 = vmatpush1.msra.mxu0 %v18
  %207 = vmatprep.subr.mxu0 0.0
  %208 = vmatpush2.msra.mxu0 0.0
  %209 = vmatprep.subr.mxu0 0.0
  %210 = vmatpush2.msra.mxu0 0.0
  %211 = vmatprep.subr.mxu0 0.0
  %212 = vmatpush2.msra.mxu0 0.0
  %213 = vmatprep.subr.mxu0 0.0
  %214 = vmatpush2.msra.mxu0 0.0
  %215 = vmatprep.subr.mxu0 0.0
  %216 = vmatpush2.msra.mxu0 0.0
  %217 = vmatprep.subr.mxu0 0.0
  %218 = vmatpush2.msra.mxu0 0.0
  %219 = vmatprep.subr.mxu0 0.0
  %220 = vmatpush2.msra.mxu0 0.0
  %221 = vmatprep.subr.mxu0 0.0
  %222 = vmatpush2.msra.mxu0 0.0
  %223 = vmatprep.subr.mxu0 0.0
  %224 = vmatpush2.msra.mxu0 0.0
  %225 = vmatprep.subr.mxu0 0.0
  %226 = vmatpush2.msra.mxu0 0.0
  %227 = vmatprep.subr.mxu0 0.0
  %228 = vmatpush2.msra.mxu0 0.0
  %229 = vmatprep.subr.mxu0 0.0
  %230 = vmatpush2.msra.mxu0 0.0
  %231 = vmatprep.subr.mxu0 0.0
  %232 = vmatpush2.msra.mxu0 0.0
  %233 = vmatprep.subr.mxu0 0.0
  %234 = vmatpush2.msra.mxu0 0.0
  %235 = vmatprep.subr.mxu0 0.0
  %236 = vmatpush2.msra.mxu0 0.0
  %237 = vmatprep.subr.mxu0 0.0
  %238 = vmatpush2.msra.mxu0 0.0
  %239 = vmatprep.mubr.f32.mxu0 0.0
  %240 = vmatmul.mubr.f32.gmra.mxu0 %v93
  %v241 = vpop.f32.mrf.mxu0
  %v242 = vadd.f32 %v84, %v241
  %v243 = vpop.f32.mrf.mxu0
  %v244 = vadd.f32 %v84, %v243
  %245 = vmatprep.mubr.f32.mxu0 0.0
  %246 = vmatmul.mubr.f32.gmra.mxu0 %v96
  %v247 = vpop.f32.mrf.mxu0
  %v248 = vadd.f32 %v89, %v247
  %v249 = vpop.f32.mrf.mxu0
  %v250 = vadd.f32 %v89, %v249
  %251 = vdwg.mxu0
  %252 = vmatprep.subr.mxu0 0.0
  %253 = vmatpush1.msra.mxu0 0.0
  %254 = vmatprep.subr.mxu0 0.0
  %255 = vmatpush1.msra.mxu0 0.0
  %256 = vmatprep.subr.mxu0 0.0
  %257 = vmatpush1.msra.mxu0 0.0
  %258 = vmatprep.subr.mxu0 0.0
  %259 = vmatpush1.msra.mxu0 0.0
  %260 = vmatprep.subr.mxu0 0.0
  %261 = vmatpush1.msra.mxu0 0.0
  %262 = vmatprep.subr.mxu0 0.0
  %263 = vmatpush1.msra.mxu0 0.0
  %264 = vmatprep.subr.mxu0 0.0
  %265 = vmatpush1.msra.mxu0 0.0
  %266 = vmatprep.subr.mxu0 %v77
  %267 = vmatpush1.msra.mxu0 %v76
  %268 = vmatprep.subr.mxu0 %v70
  %269 = vmatpush1.msra.mxu0 %v69
  %270 = vmatprep.subr.mxu0 %v63
  %271 = vmatpush1.msra.mxu0 %v62
  %272 = vmatprep.subr.mxu0 %v56
  %273 = vmatpush1.msra.mxu0 %v55
  %274 = vmatprep.subr.mxu0 %v49
  %275 = vmatpush1.msra.mxu0 %v48
  %276 = vmatprep.subr.mxu0 %v42
  %277 = vmatpush1.msra.mxu0 %v41
  %278 = vmatprep.subr.mxu0 %v35
  %279 = vmatpush1.msra.mxu0 %v34
  %280 = vmatprep.subr.mxu0 %v28
  %281 = vmatpush1.msra.mxu0 %v27
  %282 = vmatprep.subr.mxu0 %v21
  %283 = vmatpush1.msra.mxu0 %v20
  %284 = vmatprep.subr.mxu0 0.0
  %285 = vmatpush2.msra.mxu0 0.0
  %286 = vmatprep.subr.mxu0 0.0
  %287 = vmatpush2.msra.mxu0 0.0
  %288 = vmatprep.subr.mxu0 0.0
  %289 = vmatpush2.msra.mxu0 0.0
  %290 = vmatprep.subr.mxu0 0.0
  %291 = vmatpush2.msra.mxu0 0.0
  %292 = vmatprep.subr.mxu0 0.0
  %293 = vmatpush2.msra.mxu0 0.0
  %294 = vmatprep.subr.mxu0 0.0
  %295 = vmatpush2.msra.mxu0 0.0
  %296 = vmatprep.subr.mxu0 0.0
  %297 = vmatpush2.msra.mxu0 0.0
  %298 = vmatprep.subr.mxu0 0.0
  %299 = vmatpush2.msra.mxu0 0.0
  %300 = vmatprep.subr.mxu0 0.0
  %301 = vmatpush2.msra.mxu0 0.0
  %302 = vmatprep.subr.mxu0 0.0
  %303 = vmatpush2.msra.mxu0 0.0
  %304 = vmatprep.subr.mxu0 0.0
  %305 = vmatpush2.msra.mxu0 0.0
  %306 = vmatprep.subr.mxu0 0.0
  %307 = vmatpush2.msra.mxu0 0.0
  %308 = vmatprep.subr.mxu0 0.0
  %309 = vmatpush2.msra.mxu0 0.0
  %310 = vmatprep.subr.mxu0 0.0
  %311 = vmatpush2.msra.mxu0 0.0
  %312 = vmatprep.subr.mxu0 0.0
  %313 = vmatpush2.msra.mxu0 0.0
  %314 = vmatprep.subr.mxu0 0.0
  %315 = vmatpush2.msra.mxu0 0.0
  %316 = vmatprep.mubr.f32.mxu0 0.0
  %317 = vmatmul.mubr.f32.gmra.mxu0 %v93
  %v318 = vpop.f32.mrf.mxu0
  %v319 = vadd.f32 %v84, %v318
  %v320 = vpop.f32.mrf.mxu0
  %v321 = vadd.f32 %v84, %v320
  %322 = vmatprep.mubr.f32.mxu0 0.0
  %323 = vmatmul.mubr.f32.gmra.mxu0 %v96
  %v324 = vpop.f32.mrf.mxu0
  %v325 = vadd.f32 %v89, %v324
  %v326 = vpop.f32.mrf.mxu0
  %v327 = vadd.f32 %v89, %v326
  %328 = vdwg.mxu0
  %329 = vmatprep.subr.mxu0 0.0
  %330 = vmatpush1.msra.mxu0 0.0
  %331 = vmatprep.subr.mxu0 0.0
  %332 = vmatpush1.msra.mxu0 0.0
  %333 = vmatprep.subr.mxu0 0.0
  %334 = vmatpush1.msra.mxu0 0.0
  %335 = vmatprep.subr.mxu0 0.0
  %336 = vmatpush1.msra.mxu0 0.0
  %337 = vmatprep.subr.mxu0 0.0
  %338 = vmatpush1.msra.mxu0 0.0
  %339 = vmatprep.subr.mxu0 0.0
  %340 = vmatpush1.msra.mxu0 0.0
  %341 = vmatprep.subr.mxu0 0.0
  %342 = vmatpush1.msra.mxu0 0.0
  %343 = vmatprep.subr.mxu0 0.0
  %344 = vmatpush1.msra.mxu0 %v78
  %345 = vmatprep.subr.mxu0 0.0
  %346 = vmatpush1.msra.mxu0 %v71
  %347 = vmatprep.subr.mxu0 0.0
  %348 = vmatpush1.msra.mxu0 %v64
  %349 = vmatprep.subr.mxu0 0.0
  %350 = vmatpush1.msra.mxu0 %v57
  %351 = vmatprep.subr.mxu0 0.0
  %352 = vmatpush1.msra.mxu0 %v50
  %353 = vmatprep.subr.mxu0 0.0
  %354 = vmatpush1.msra.mxu0 %v43
  %355 = vmatprep.subr.mxu0 0.0
  %356 = vmatpush1.msra.mxu0 %v36
  %357 = vmatprep.subr.mxu0 0.0
  %358 = vmatpush1.msra.mxu0 %v29
  %359 = vmatprep.subr.mxu0 0.0
  %360 = vmatpush1.msra.mxu0 %v22
  %361 = vmatprep.subr.mxu0 0.0
  %362 = vmatpush2.msra.mxu0 0.0
  %363 = vmatprep.subr.mxu0 0.0
  %364 = vmatpush2.msra.mxu0 0.0
  %365 = vmatprep.subr.mxu0 0.0
  %366 = vmatpush2.msra.mxu0 0.0
  %367 = vmatprep.subr.mxu0 0.0
  %368 = vmatpush2.msra.mxu0 0.0
  %369 = vmatprep.subr.mxu0 0.0
  %370 = vmatpush2.msra.mxu0 0.0
  %371 = vmatprep.subr.mxu0 0.0
  %372 = vmatpush2.msra.mxu0 0.0
  %373 = vmatprep.subr.mxu0 0.0
  %374 = vmatpush2.msra.mxu0 0.0
  %375 = vmatprep.subr.mxu0 0.0
  %376 = vmatpush2.msra.mxu0 0.0
  %377 = vmatprep.subr.mxu0 0.0
  %378 = vmatpush2.msra.mxu0 0.0
  %379 = vmatprep.subr.mxu0 0.0
  %380 = vmatpush2.msra.mxu0 0.0
  %381 = vmatprep.subr.mxu0 0.0
  %382 = vmatpush2.msra.mxu0 0.0
  %383 = vmatprep.subr.mxu0 0.0
  %384 = vmatpush2.msra.mxu0 0.0
  %385 = vmatprep.subr.mxu0 0.0
  %386 = vmatpush2.msra.mxu0 0.0
  %387 = vmatprep.subr.mxu0 0.0
  %388 = vmatpush2.msra.mxu0 0.0
  %389 = vmatprep.subr.mxu0 0.0
  %390 = vmatpush2.msra.mxu0 0.0
  %391 = vmatprep.subr.mxu0 0.0
  %392 = vmatpush2.msra.mxu0 0.0
  %393 = vmatprep.mubr.f32.mxu0 0.0
  %394 = vmatmul.mubr.f32.gmra.mxu0 %v93
  %v395 = vpop.f32.mrf.mxu0
  %v396 = vadd.f32 %v84, %v395
  %v397 = vpop.f32.mrf.mxu0
  %398 = vmatprep.mubr.f32.mxu0 0.0
  %399 = vmatmul.mubr.f32.gmra.mxu0 %v96
  %v400 = vpop.f32.mrf.mxu0
  %v401 = vadd.f32 %v89, %v400
  %v402 = vpop.f32.mrf.mxu0
  %403 = vdwg.mxu0
  %v404 = vmax.f32 %v165, 0.0
  %v405 = vmax.f32 %v167, 0.0
  %v406 = vmax.f32 %v242, 0.0
  %v407 = vmax.f32 %v244, 0.0
  %v408 = vmax.f32 %v319, 0.0
  %v409 = vmax.f32 %v321, 0.0
  %v410 = vmax.f32 %v396, 0.0
  %v411 = vmax.f32 %v171, 0.0
  %v412 = vmax.f32 %v173, 0.0
  %v413 = vmax.f32 %v248, 0.0
  %v414 = vmax.f32 %v250, 0.0
  %v415 = vmax.f32 %v325, 0.0
  %v416 = vmax.f32 %v327, 0.0
  %v417 = vmax.f32 %v401, 0.0
  %418 = vst [vmem:[%s3] sm:$0xff] %v404
  %419 = vst [vmem:[%s3 + $0x8] sm:$0xff] %v405
  %420 = vst [vmem:[%s3 + $0x10] sm:$0xff] %v406
  %421 = vst [vmem:[%s3 + $0x18] sm:$0xff] %v407
  %422 = vst [vmem:[%s3 + $0x20] sm:$0xff] %v408
  %423 = vst [vmem:[%s3 + $0x28] sm:$0xff] %v409
  %424 = vst [vmem:[%s3 + $0x30] sm:$0xff] %v410
  %425 = vst [vmem:[%s3 + $0x38] sm:$0xff] %v411
  %426 = vst [vmem:[%s3 + $0x40] sm:$0xff] %v412
  %427 = vst [vmem:[%s3 + $0x48] sm:$0xff] %v413
  %428 = vst [vmem:[%s3 + $0x50] sm:$0xff] %v414
  %429 = vst [vmem:[%s3 + $0x58] sm:$0xff] %v415
  %430 = vst [vmem:[%s3 + $0x60] sm:$0xff] %v416
  %431 = vst [vmem:[%s3 + $0x68] sm:$0xff] %v417
  // Predicated region
  $region14: #{onion_decoder.5} parent=0 // pred_check
    _
  $region15: #{onion_decoder.5} parent=0 // pred_check_branch
    %433 = sbr.rel (0) target = $region17
  $region16: #{onion_decoder.5} parent=0 // pred_region
    _
  $region17: #{onion_decoder.5} parent=0 // pred_fallthru
    _
  // Predicated region
  $region18: #{onion_decoder.5} parent=0 // pred_check
    _
  $region19: #{onion_decoder.5} parent=0 // pred_check_branch
    %435 = sbr.rel (0) target = $region21
  $region20: #{onion_decoder.5} parent=0 // pred_region
    _
  $region21: #{onion_decoder.5} parent=0 // pred_fallthru
    _

// kernel: onion_decoder.6
$region0: #{onion_decoder.6}
  #allocation0 [shape = 'u32[]', space=smem, size = 0x4, offset = 0x4, fixed_abs, tag = 'smem constant byte address 0x4 - core index']
  #allocation1 [shape = 'u32[144,128]{1,0:T(1,128)}', space=vmem, size = 0x12000, scoped, tag = 'internal scratch']
  %s0 = inlined_call_operand.vmem [shape: f32[144,7168], index: 0, kind: input, shape index: {}]
  %s1 = inlined_call_operand.vmem [shape: f32[8,144], index: 1, kind: input, shape index: {}]
  %s2 = inlined_call_operand.vmem [shape: f32[8,1], index: 2, kind: input, shape index: {}]
  %s3 = inlined_call_operand.vmem [shape: f32[8,7168], index: 3, kind: output, shape index: {}]
  %s4 = sld [smem:[#allocation0]]
  $region68: #{onion_decoder.6} parent=0
    _
  %s6 = ssub.s32 1, %s4
  %s7 = scalar_select 0, %s6, %s4
  $region1: #{onion_decoder.6} parent=0
    #allocation2 [shape = 'u8[1179648]{0}', space=vmem, size = 0x120000, scoped, tag = 'input window, operand 0']
    loop: start=0, step=1, limit=9
    $region2: #{onion_decoder.6} parent=1 // loop_pre_header
      _
    $region3: #{onion_decoder.6} parent=1 // loop_header
      %s9 = sphi 0, %s13
      %p10 = scmp.ge.s32.totalorder %s9, 9
      %s19 = sphi 0, %s21
      %s22 = sphi 0, %s19
      %s23 = sphi 0, %s22
      %s39 = sphi 0, %s23
      %s43 = sphi 0, %s43
      %s45 = sphi 0, %s43
      %s46 = sphi 0, %s45
      %s60 = sphi 0, %s46
      %s64 = sphi 0, %s64
      %s66 = sphi 0, %s64
      %s67 = sphi 0, %s66
      %s81 = sphi 0, %s67
      %s87 = sphi 0, %s89
      %s90 = sphi 0, %s87
      %s91 = sphi 0, %s90
      %s107 = sphi 0, %s91
    $region4: #{onion_decoder.6} parent=1 // loop_header_branch
      %12 = sbr.rel (%p10) target = $region8
    $region5: #{onion_decoder.6} parent=1 // loop_body
      %s14 = ssub.s32 %s9, 1
      %s15 = ssub.s32 %s9, 2
      %s16 = sadd.s32 %s9, 1
      %s17 = ssub.s32 %s9, %s16
      %p18 = scmp.eq.s32.totalorder %s17, 0
      %s20 = sadd.s32 %s19, 1
      %s21 = scalar_select %p18, %s19, %s20
      %p24 = pneg %p18
      %p25 = scmp.eq.s32.totalorder %s9, 6
      %p26 = por %p24, %p25
      %p27 = scmp.ne.s32.totalorder %s19, %s22
      %p28 = scmp.eq.s32.totalorder %s9, 0
      %p29 = por %p27, %p28
      %p30 = scmp.ne.s32.totalorder %s19, %s22
      %p31 = scmp.eq.s32.totalorder %s14, 6
      %p32 = por %p30, %p31
      %p33 = scmp.ne.s32.totalorder %s22, %s23
      %p34 = scmp.eq.s32.totalorder %s14, 0
      %p35 = por %p33, %p34
      %p36 = scmp.ne.s32.totalorder %s22, %s23
      %p37 = scmp.eq.s32.totalorder %s15, 6
      %p38 = por %p36, %p37
      %p40 = scmp.ne.s32.totalorder %s23, %s39
      %p41 = scmp.eq.s32.totalorder %s15, 0
      %p42 = por %p40, %p41
      %s44 = sadd.s32 %s43, 1
      %p47 = scmp.eq.s32.totalorder %s9, 6
      %p48 = scmp.ne.s32.totalorder %s43, %s45
      %p49 = scmp.eq.s32.totalorder %s9, 0
      %p50 = por %p48, %p49
      %p51 = scmp.ne.s32.totalorder %s43, %s45
      %p52 = scmp.eq.s32.totalorder %s14, 6
      %p53 = por %p51, %p52
      %p54 = scmp.ne.s32.totalorder %s45, %s46
      %p55 = scmp.eq.s32.totalorder %s14, 0
      %p56 = por %p54, %p55
      %p57 = scmp.ne.s32.totalorder %s45, %s46
      %p58 = scmp.eq.s32.totalorder %s15, 6
      %p59 = por %p57, %p58
      %p61 = scmp.ne.s32.totalorder %s46, %s60
      %p62 = scmp.eq.s32.totalorder %s15, 0
      %p63 = por %p61, %p62
      %s65 = sadd.s32 %s64, 1
      %p68 = scmp.eq.s32.totalorder %s9, 6
      %p69 = scmp.ne.s32.totalorder %s64, %s66
      %p70 = scmp.eq.s32.totalorder %s9, 0
      %p71 = por %p69, %p70
      %p72 = scmp.ne.s32.totalorder %s64, %s66
      %p73 = scmp.eq.s32.totalorder %s14, 6
      %p74 = por %p72, %p73
      %p75 = scmp.ne.s32.totalorder %s66, %s67
      %p76 = scmp.eq.s32.totalorder %s14, 0
      %p77 = por %p75, %p76
      %p78 = scmp.ne.s32.totalorder %s66, %s67
      %p79 = scmp.eq.s32.totalorder %s15, 6
      %p80 = por %p78, %p79
      %p82 = scmp.ne.s32.totalorder %s67, %s81
      %p83 = scmp.eq.s32.totalorder %s15, 0
      %p84 = por %p82, %p83
      %s85 = ssub.s32 %s9, %s16
      %p86 = scmp.eq.s32.totalorder %s85, 0
      %s88 = sadd.s32 %s87, 1
      %s89 = scalar_select %p86, %s87, %s88
      %p92 = pneg %p86
      %p93 = scmp.eq.s32.totalorder %s9, 6
      %p94 = por %p92, %p93
      %p95 = scmp.ne.s32.totalorder %s87, %s90
      %p96 = scmp.eq.s32.totalorder %s9, 0
      %p97 = por %p95, %p96
      %p98 = scmp.ne.s32.totalorder %s87, %s90
      %p99 = scmp.eq.s32.totalorder %s14, 6
      %p100 = por %p98, %p99
      %p101 = scmp.ne.s32.totalorder %s90, %s91
      %p102 = scmp.eq.s32.totalorder %s14, 0
      %p103 = por %p101, %p102
      %p104 = scmp.ne.s32.totalorder %s90, %s91
      %p105 = scmp.eq.s32.totalorder %s15, 6
      %p106 = por %p104, %p105
      %p108 = scmp.ne.s32.totalorder %s91, %s107
      %p109 = scmp.eq.s32.totalorder %s15, 0
      %p110 = por %p108, %p109
      %p111 = scmp.le.s32.totalorder 1, %s9
      %p112 = scmp.lt.s32.totalorder %s9, 8
      %p113 = pnand %p111, %p112
      %p114 = pneg %p113
      // Predicated region
      $region9: #{onion_decoder.6} parent=5 // pred_check
        _
      $region10: #{onion_decoder.6} parent=5 // pred_check_branch
        %116 = sbr.rel (%p113) target = $region12
      $region11: #{onion_decoder.6} parent=5 // pred_region
        %s117 = ssub.s32 %s9, 1
        // Predicated region
        $region13: #{onion_decoder.6} parent=11 // pred_check
          %p118 = pneg %p56
        $region14: #{onion_decoder.6} parent=11 // pred_check_branch
          %120 = sbr.rel (%p118) target = $region16
        $region15: #{onion_decoder.6} parent=11 // pred_region
          _
        $region16: #{onion_decoder.6} parent=11 // pred_fallthru
          _
        // Predicated region
        $region17: #{onion_decoder.6} parent=11 // pred_check
          %p121 = pneg %p77
        $region18: #{onion_decoder.6} parent=11 // pred_check_branch
          %123 = sbr.rel (%p121) target = $region20
        $region19: #{onion_decoder.6} parent=11 // pred_region
          _
        $region20: #{onion_decoder.6} parent=11 // pred_fallthru
          _
      $region12: #{onion_decoder.6} parent=5 // pred_fallthru
        _
      %p124 = scmp.lt.s32.totalorder %s9, 7
      // Predicated region
      $region21: #{onion_decoder.6} parent=5 // pred_check
        %p125 = pneg %p124
      $region22: #{onion_decoder.6} parent=5 // pred_check_branch
        %127 = sbr.rel (%p125) target = $region24
      $region23: #{onion_decoder.6} parent=5 // pred_region
        // Predicated region
        $region25: #{onion_decoder.6} parent=23 // pred_check
          %p128 = pneg %p29
        $region26: #{onion_decoder.6} parent=23 // pred_check_branch
          %130 = sbr.rel (%p128) target = $region28
        $region27: #{onion_decoder.6} parent=23 // pred_region
          %s131 = sand.u32 %s19, 1
          %s132 = sand.u32 %s19, 1
          %s133 = smul.addr %s132, 1152
          %s134 = scalar_lea.vmem [#allocation2], %s133
          %s135 = smul.u32 8, %s9
          %s136 = smul.addr %s135, 8
          %s137 = scalar_lea.vmem %s0, %s136
          // Predicated region
          $region29: #{onion_decoder.6} parent=27 // pred_check
            _
          $region30: #{onion_decoder.6} parent=27 // pred_check_branch
            %139 = sbr.rel (0) target = $region32
          $region31: #{onion_decoder.6} parent=27 // pred_region
            // Predicated region
            $region33: #{onion_decoder.6} parent=31 // pred_check
              _
            $region34: #{onion_decoder.6} parent=31 // pred_check_branch
              %141 = sbr.rel (0) target = $region36
            $region35: #{onion_decoder.6} parent=31 // pred_region
              loop: start=0, step=1, limit=1
              $region37: #{onion_decoder.6} parent=35 // loop_pre_header
                _
              $region38: #{onion_decoder.6} parent=35 // loop_header
                %s143 = sphi 0, %s147
                %p144 = scmp.ge.s32.totalorder %s143, 1
                %s148 = sphi %s137, %s137
                %s149 = sphi %s134, %s134
              $region39: #{onion_decoder.6} parent=35 // loop_header_branch
                %146 = sbr.rel (%p144) target = $region43
              $region40: #{onion_decoder.6} parent=35 // loop_body
                %v150 = vld [vmem:[%s148] sm:$0xff]
                %151 = vst [vmem:[%s149] sm:$0xff] %v150
                %v152 = vld [vmem:[%s148 + $0x8] sm:$0xff]
                %153 = vst [vmem:[%s149 + $0x8] sm:$0xff] %v152
                %v154 = vld [vmem:[%s148 + $0x10] sm:$0xff]
                %155 = vst [vmem:[%s149 + $0x10] sm:$0xff] %v154
                %v156 = vld [vmem:[%s148 + $0x18] sm:$0xff]
                %157 = vst [vmem:[%s149 + $0x18] sm:$0xff] %v156
                %v158 = vld [vmem:[%s148 + $0x20] sm:$0xff]
                %159 = vst [vmem:[%s149 + $0x20] sm:$0xff] %v158
                %v160 = vld [vmem:[%s148 + $0x28] sm:$0xff]
                %161 = vst [vmem:[%s149 + $0x28] sm:$0xff] %v160
                %v162 = vld [vmem:[%s148 + $0x30] sm:$0xff]
                %163 = vst [vmem:[%s149 + $0x30] sm:$0xff] %v162
                %v164 = vld [vmem:[%s148 + $0x38] sm:$0xff]
                %165 = vst [vmem:[%s149 + $0x38] sm:$0xff] %v164
                %v166 = vld [vmem:[%s148 + $0x1c0] sm:$0xff]
                %167 = vst [vmem:[%s149 + $0x40] sm:$0xff] %v166
                %v168 = vld [vmem:[%s148 + $0x1c8] sm:$0xff]
                %169 = vst [vmem:[%s149 + $0x48] sm:$0xff] %v168
                %v170 = vld [vmem:[%s148 + $0x1d0] sm:$0xff]
                %171 = vst [vmem:[%s149 + $0x50] sm:$0xff] %v170
                %v172 = vld [vmem:[%s148 + $0x1d8] sm:$0xff]
                %173 = vst [vmem:[%s149 + $0x58] sm:$0xff] %v172
                %v174 = vld [vmem:[%s148 + $0x1e0] sm:$0xff]
                %175 = vst [vmem:[%s149 + $0x60] sm:$0xff] %v174
                %v176 = vld [vmem:[%s148 + $0x1e8] sm:$0xff]
                %177 = vst [vmem:[%s149 + $0x68] sm:$0xff] %v176
                %v178 = vld [vmem:[%s148 + $0x1f0] sm:$0xff]
                %179 = vst [vmem:[%s149 + $0x70] sm:$0xff] %v178
                %v180 = vld [vmem:[%s148 + $0x1f8] sm:$0xff]
                %181 = vst [vmem:[%s149 + $0x78] sm:$0xff] %v180
                %v182 = vld [vmem:[%s148 + $0x380] sm:$0xff]
                %183 = vst [vmem:[%s149 + $0x80] sm:$0xff] %v182
                %v184 = vld [vmem:[%s148 + $0x388] sm:$0xff]
                %185 = vst [vmem:[%s149 + $0x88] sm:$0xff] %v184
                %v186 = vld [vmem:[%s148 + $0x390] sm:$0xff]
                %187 = vst [vmem:[%s149 + $0x90] sm:$0xff] %v186
                %v188 = vld [vmem:[%s148 + $0x398] sm:$0xff]
                %189 = vst [vmem:[%s149 + $0x98] sm:$0xff] %v188
                %v190 = vld [vmem:[%s148 + $0x3a0] sm:$0xff]
                %191 = vst [vmem:[%s149 + $0xa0] sm:$0xff] %v190
                %v192 = vld [vmem:[%s148 + $0x3a8] sm:$0xff]
                %193 = vst [vmem:[%s149 + $0xa8] sm:$0xff] %v192
                %v194 = vld [vmem:[%s148 + $0x3b0] sm:$0xff]
                %195 = vst [vmem:[%s149 + $0xb0] sm:$0xff] %v194
                %v196 = vld [vmem:[%s148 + $0x3b8] sm:$0xff]
                %197 = vst [vmem:[%s149 + $0xb8] sm:$0xff] %v196
                %v198 = vld [vmem:[%s148 + $0x540] sm:$0xff]
                %199 = vst [vmem:[%s149 + $0xc0] sm:$0xff] %v198
                %v200 = vld [vmem:[%s148 + $0x548] sm:$0xff]
                %201 = vst [vmem:[%s149 + $0xc8] sm:$0xff] %v200
                %v202 = vld [vmem:[%s148 + $0x550] sm:$0xff]
                %203 = vst [vmem:[%s149 + $0xd0] sm:$0xff] %v202
                %v204 = vld [vmem:[%s148 + $0x558] sm:$0xff]
                %205 = vst [vmem:[%s149 + $0xd8] sm:$0xff] %v204
                %v206 = vld [vmem:[%s148 + $0x560] sm:$0xff]
                %207 = vst [vmem:[%s149 + $0xe0] sm:$0xff] %v206
                %v208 = vld [vmem:[%s148 + $0x568] sm:$0xff]
                %209 = vst [vmem:[%s149 + $0xe8] sm:$0xff] %v208
                %v210 = vld [vmem:[%s148 + $0x570] sm:$0xff]
                %211 = vst [vmem:[%s149 + $0xf0] sm:$0xff] %v210
                %v212 = vld [vmem:[%s148 + $0x578] sm:$0xff]
                %213 = vst [vmem:[%s149 + $0xf8] sm:$0xff] %v212
                %v214 = vld [vmem:[%s148 + $0x700] sm:$0xff]
                %215 = vst [vmem:[%s149 + $0x100] sm:$0xff] %v214
                %v216 = vld [vmem:[%s148 + $0x708] sm:$0xff]
                %217 = vst [vmem:[%s149 + $0x108] sm:$0xff] %v216
                %v218 = vld [vmem:[%s148 + $0x710] sm:$0xff]
                %219 = vst [vmem:[%s149 + $0x110] sm:$0xff] %v218
                %v220 = vld [vmem:[%s148 + $0x718] sm:$0xff]
                %221 = vst [vmem:[%s149 + $0x118] sm:$0xff] %v220
                %v222 = vld [vmem:[%s148 + $0x720] sm:$0xff]
                %223 = vst [vmem:[%s149 + $0x120] sm:$0xff] %v222
                %v224 = vld [vmem:[%s148 + $0x728] sm:$0xff]
                %225 = vst [vmem:[%s149 + $0x128] sm:$0xff] %v224
                %v226 = vld [vmem:[%s148 + $0x730] sm:$0xff]
                %227 = vst [vmem:[%s149 + $0x130] sm:$0xff] %v226
                %v228 = vld [vmem:[%s148 + $0x738] sm:$0xff]
                %229 = vst [vmem:[%s149 + $0x138] sm:$0xff] %v228
                %v230 = vld [vmem:[%s148 + $0x8c0] sm:$0xff]
                %231 = vst [vmem:[%s149 + $0x140] sm:$0xff] %v230
                %v232 = vld [vmem:[%s148 + $0x8c8] sm:$0xff]
                %233 = vst [vmem:[%s149 + $0x148] sm:$0xff] %v232
                %v234 = vld [vmem:[%s148 + $0x8d0] sm:$0xff]
                %235 = vst [vmem:[%s149 + $0x150] sm:$0xff] %v234
                %v236 = vld [vmem:[%s148 + $0x8d8] sm:$0xff]
                %237 = vst [vmem:[%s149 + $0x158] sm:$0xff] %v236
                %v238 = vld [vmem:[%s148 + $0x8e0] sm:$0xff]
                %239 = vst [vmem:[%s149 + $0x160] sm:$0xff] %v238
                %v240 = vld [vmem:[%s148 + $0x8e8] sm:$0xff]
                %241 = vst [vmem:[%s149 + $0x168] sm:$0xff] %v240
                %v242 = vld [vmem:[%s148 + $0x8f0] sm:$0xff]
                %243 = vst [vmem:[%s149 + $0x170] sm:$0xff] %v242
                %v244 = vld [vmem:[%s148 + $0x8f8] sm:$0xff]
                %245 = vst [vmem:[%s149 + $0x178] sm:$0xff] %v244
                %v246 = vld [vmem:[%s148 + $0xa80] sm:$0xff]
                %247 = vst [vmem:[%s149 + $0x180] sm:$0xff] %v246
                %v248 = vld [vmem:[%s148 + $0xa88] sm:$0xff]
                %249 = vst [vmem:[%s149 + $0x188] sm:$0xff] %v248
                %v250 = vld [vmem:[%s148 + $0xa90] sm:$0xff]
                %251 = vst [vmem:[%s149 + $0x190] sm:$0xff] %v250
                %v252 = vld [vmem:[%s148 + $0xa98] sm:$0xff]
                %253 = vst [vmem:[%s149 + $0x198] sm:$0xff] %v252
                %v254 = vld [vmem:[%s148 + $0xaa0] sm:$0xff]
                %255 = vst [vmem:[%s149 + $0x1a0] sm:$0xff] %v254
                %v256 = vld [vmem:[%s148 + $0xaa8] sm:$0xff]
                %257 = vst [vmem:[%s149 + $0x1a8] sm:$0xff] %v256
                %v258 = vld [vmem:[%s148 + $0xab0] sm:$0xff]
                %259 = vst [vmem:[%s149 + $0x1b0] sm:$0xff] %v258
                %v260 = vld [vmem:[%s148 + $0xab8] sm:$0xff]
                %261 = vst [vmem:[%s149 + $0x1b8] sm:$0xff] %v260
                %v262 = vld [vmem:[%s148 + $0xc40] sm:$0xff]
                %263 = vst [vmem:[%s149 + $0x1c0] sm:$0xff] %v262
                %v264 = vld [vmem:[%s148 + $0xc48] sm:$0xff]
                %265 = vst [vmem:[%s149 + $0x1c8] sm:$0xff] %v264
                %v266 = vld [vmem:[%s148 + $0xc50] sm:$0xff]
                %267 = vst [vmem:[%s149 + $0x1d0] sm:$0xff] %v266
                %v268 = vld [vmem:[%s148 + $0xc58] sm:$0xff]
                %269 = vst [vmem:[%s149 + $0x1d8] sm:$0xff] %v268
                %v270 = vld [vmem:[%s148 + $0xc60] sm:$0xff]
                %271 = vst [vmem:[%s149 + $0x1e0] sm:$0xff] %v270
                %v272 = vld [vmem:[%s148 + $0xc68] sm:$0xff]
                %273 = vst [vmem:[%s149 + $0x1e8] sm:$0xff] %v272
                %v274 = vld [vmem:[%s148 + $0xc70] sm:$0xff]
                %275 = vst [vmem:[%s149 + $0x1f0] sm:$0xff] %v274
                %v276 = vld [vmem:[%s148 + $0xc78] sm:$0xff]
                %277 = vst [vmem:[%s149 + $0x1f8] sm:$0xff] %v276
                %v278 = vld [vmem:[%s148 + $0xe00] sm:$0xff]
                %279 = vst [vmem:[%s149 + $0x200] sm:$0xff] %v278
                %v280 = vld [vmem:[%s148 + $0xe08] sm:$0xff]
                %281 = vst [vmem:[%s149 + $0x208] sm:$0xff] %v280
                %v282 = vld [vmem:[%s148 + $0xe10] sm:$0xff]
                %283 = vst [vmem:[%s149 + $0x210] sm:$0xff] %v282
                %v284 = vld [vmem:[%s148 + $0xe18] sm:$0xff]
                %285 = vst [vmem:[%s149 + $0x218] sm:$0xff] %v284
                %v286 = vld [vmem:[%s148 + $0xe20] sm:$0xff]
                %287 = vst [vmem:[%s149 + $0x220] sm:$0xff] %v286
                %v288 = vld [vmem:[%s148 + $0xe28] sm:$0xff]
                %289 = vst [vmem:[%s149 + $0x228] sm:$0xff] %v288
                %v290 = vld [vmem:[%s148 + $0xe30] sm:$0xff]
                %291 = vst [vmem:[%s149 + $0x230] sm:$0xff] %v290
                %v292 = vld [vmem:[%s148 + $0xe38] sm:$0xff]
                %293 = vst [vmem:[%s149 + $0x238] sm:$0xff] %v292
                %v294 = vld [vmem:[%s148 + $0xfc0] sm:$0xff]
                %295 = vst [vmem:[%s149 + $0x240] sm:$0xff] %v294
                %v296 = vld [vmem:[%s148 + $0xfc8] sm:$0xff]
                %297 = vst [vmem:[%s149 + $0x248] sm:$0xff] %v296
                %v298 = vld [vmem:[%s148 + $0xfd0] sm:$0xff]
                %299 = vst [vmem:[%s149 + $0x250] sm:$0xff] %v298
                %v300 = vld [vmem:[%s148 + $0xfd8] sm:$0xff]
                %301 = vst [vmem:[%s149 + $0x258] sm:$0xff] %v300
                %v302 = vld [vmem:[%s148 + $0xfe0] sm:$0xff]
                %303 = vst [vmem:[%s149 + $0x260] sm:$0xff] %v302
                %v304 = vld [vmem:[%s148 + $0xfe8] sm:$0xff]
                %305 = vst [vmem:[%s149 + $0x268] sm:$0xff] %v304
                %v306 = vld [vmem:[%s148 + $0xff0] sm:$0xff]
                %307 = vst [vmem:[%s149 + $0x270] sm:$0xff] %v306
                %v308 = vld [vmem:[%s148 + $0xff8] sm:$0xff]
                %309 = vst [vmem:[%s149 + $0x278] sm:$0xff] %v308
                %v310 = vld [vmem:[%s148 + $0x1180] sm:$0xff]
                %311 = vst [vmem:[%s149 + $0x280] sm:$0xff] %v310
                %v312 = vld [vmem:[%s148 + $0x1188] sm:$0xff]
                %313 = vst [vmem:[%s149 + $0x288] sm:$0xff] %v312
                %v314 = vld [vmem:[%s148 + $0x1190] sm:$0xff]
                %315 = vst [vmem:[%s149 + $0x290] sm:$0xff] %v314
                %v316 = vld [vmem:[%s148 + $0x1198] sm:$0xff]
                %317 = vst [vmem:[%s149 + $0x298] sm:$0xff] %v316
                %v318 = vld [vmem:[%s148 + $0x11a0] sm:$0xff]
                %319 = vst [vmem:[%s149 + $0x2a0] sm:$0xff] %v318
                %v320 = vld [vmem:[%s148 + $0x11a8] sm:$0xff]
                %321 = vst [vmem:[%s149 + $0x2a8] sm:$0xff] %v320
                %v322 = vld [vmem:[%s148 + $0x11b0] sm:$0xff]
                %323 = vst [vmem:[%s149 + $0x2b0] sm:$0xff] %v322
                %v324 = vld [vmem:[%s148 + $0x11b8] sm:$0xff]
                %325 = vst [vmem:[%s149 + $0x2b8] sm:$0xff] %v324
                %v326 = vld [vmem:[%s148 + $0x1340] sm:$0xff]
                %327 = vst [vmem:[%s149 + $0x2c0] sm:$0xff] %v326
                %v328 = vld [vmem:[%s148 + $0x1348] sm:$0xff]
                %329 = vst [vmem:[%s149 + $0x2c8] sm:$0xff] %v328
                %v330 = vld [vmem:[%s148 + $0x1350] sm:$0xff]
                %331 = vst [vmem:[%s149 + $0x2d0] sm:$0xff] %v330
                %v332 = vld [vmem:[%s148 + $0x1358] sm:$0xff]
                %333 = vst [vmem:[%s149 + $0x2d8] sm:$0xff] %v332
                %v334 = vld [vmem:[%s148 + $0x1360] sm:$0xff]
                %335 = vst [vmem:[%s149 + $0x2e0] sm:$0xff] %v334
                %v336 = vld [vmem:[%s148 + $0x1368] sm:$0xff]
                %337 = vst [vmem:[%s149 + $0x2e8] sm:$0xff] %v336
                %v338 = vld [vmem:[%s148 + $0x1370] sm:$0xff]
                %339 = vst [vmem:[%s149 + $0x2f0] sm:$0xff] %v338
                %v340 = vld [vmem:[%s148 + $0x1378] sm:$0xff]
                %341 = vst [vmem:[%s149 + $0x2f8] sm:$0xff] %v340
                %v342 = vld [vmem:[%s148 + $0x1500] sm:$0xff]
                %343 = vst [vmem:[%s149 + $0x300] sm:$0xff] %v342
                %v344 = vld [vmem:[%s148 + $0x1508] sm:$0xff]
                %345 = vst [vmem:[%s149 + $0x308] sm:$0xff] %v344
                %v346 = vld [vmem:[%s148 + $0x1510] sm:$0xff]
                %347 = vst [vmem:[%s149 + $0x310] sm:$0xff] %v346
                %v348 = vld [vmem:[%s148 + $0x1518] sm:$0xff]
                %349 = vst [vmem:[%s149 + $0x318] sm:$0xff] %v348
                %v350 = vld [vmem:[%s148 + $0x1520] sm:$0xff]
                %351 = vst [vmem:[%s149 + $0x320] sm:$0xff] %v350
                %v352 = vld [vmem:[%s148 + $0x1528] sm:$0xff]
                %353 = vst [vmem:[%s149 + $0x328] sm:$0xff] %v352
                %v354 = vld [vmem:[%s148 + $0x1530] sm:$0xff]
                %355 = vst [vmem:[%s149 + $0x330] sm:$0xff] %v354
                %v356 = vld [vmem:[%s148 + $0x1538] sm:$0xff]
                %357 = vst [vmem:[%s149 + $0x338] sm:$0xff] %v356
                %v358 = vld [vmem:[%s148 + $0x16c0] sm:$0xff]
                %359 = vst [vmem:[%s149 + $0x340] sm:$0xff] %v358
                %v360 = vld [vmem:[%s148 + $0x16c8] sm:$0xff]
                %361 = vst [vmem:[%s149 + $0x348] sm:$0xff] %v360
                %v362 = vld [vmem:[%s148 + $0x16d0] sm:$0xff]
                %363 = vst [vmem:[%s149 + $0x350] sm:$0xff] %v362
                %v364 = vld [vmem:[%s148 + $0x16d8] sm:$0xff]
                %365 = vst [vmem:[%s149 + $0x358] sm:$0xff] %v364
                %v366 = vld [vmem:[%s148 + $0x16e0] sm:$0xff]
                %367 = vst [vmem:[%s149 + $0x360] sm:$0xff] %v366
                %v368 = vld [vmem:[%s148 + $0x16e8] sm:$0xff]
                %369 = vst [vmem:[%s149 + $0x368] sm:$0xff] %v368
                %v370 = vld [vmem:[%s148 + $0x16f0] sm:$0xff]
                %371 = vst [vmem:[%s149 + $0x370] sm:$0xff] %v370
                %v372 = vld [vmem:[%s148 + $0x16f8] sm:$0xff]
                %373 = vst [vmem:[%s149 + $0x378] sm:$0xff] %v372
                %v374 = vld [vmem:[%s148 + $0x1880] sm:$0xff]
                %375 = vst [vmem:[%s149 + $0x380] sm:$0xff] %v374
                %v376 = vld [vmem:[%s148 + $0x1888] sm:$0xff]
                %377 = vst [vmem:[%s149 + $0x388] sm:$0xff] %v376
                %v378 = vld [vmem:[%s148 + $0x1890] sm:$0xff]
                %379 = vst [vmem:[%s149 + $0x390] sm:$0xff] %v378
                %v380 = vld [vmem:[%s148 + $0x1898] sm:$0xff]
                %381 = vst [vmem:[%s149 + $0x398] sm:$0xff] %v380
                %v382 = vld [vmem:[%s148 + $0x18a0] sm:$0xff]
                %383 = vst [vmem:[%s149 + $0x3a0] sm:$0xff] %v382
                %v384 = vld [vmem:[%s148 + $0x18a8] sm:$0xff]
                %385 = vst [vmem:[%s149 + $0x3a8] sm:$0xff] %v384
                %v386 = vld [vmem:[%s148 + $0x18b0] sm:$0xff]
                %387 = vst [vmem:[%s149 + $0x3b0] sm:$0xff] %v386
                %v388 = vld [vmem:[%s148 + $0x18b8] sm:$0xff]
                %389 = vst [vmem:[%s149 + $0x3b8] sm:$0xff] %v388
                %v390 = vld [vmem:[%s148 + $0x1a40] sm:$0xff]
                %391 = vst [vmem:[%s149 + $0x3c0] sm:$0xff] %v390
                %v392 = vld [vmem:[%s148 + $0x1a48] sm:$0xff]
                %393 = vst [vmem:[%s149 + $0x3c8] sm:$0xff] %v392
                %v394 = vld [vmem:[%s148 + $0x1a50] sm:$0xff]
                %395 = vst [vmem:[%s149 + $0x3d0] sm:$0xff] %v394
                %v396 = vld [vmem:[%s148 + $0x1a58] sm:$0xff]
                %397 = vst [vmem:[%s149 + $0x3d8] sm:$0xff] %v396
                %v398 = vld [vmem:[%s148 + $0x1a60] sm:$0xff]
                %399 = vst [vmem:[%s149 + $0x3e0] sm:$0xff] %v398
                %v400 = vld [vmem:[%s148 + $0x1a68] sm:$0xff]
                %401 = vst [vmem:[%s149 + $0x3e8] sm:$0xff] %v400
                %v402 = vld [vmem:[%s148 + $0x1a70] sm:$0xff]
                %403 = vst [vmem:[%s149 + $0x3f0] sm:$0xff] %v402
                %v404 = vld [vmem:[%s148 + $0x1a78] sm:$0xff]
                %405 = vst [vmem:[%s149 + $0x3f8] sm:$0xff] %v404
                %v406 = vld [vmem:[%s148 + $0x1c00] sm:$0xff]
                %407 = vst [vmem:[%s149 + $0x400] sm:$0xff] %v406
                %v408 = vld [vmem:[%s148 + $0x1c08] sm:$0xff]
                %409 = vst [vmem:[%s149 + $0x408] sm:$0xff] %v408
                %v410 = vld [vmem:[%s148 + $0x1c10] sm:$0xff]
                %411 = vst [vmem:[%s149 + $0x410] sm:$0xff] %v410
                %v412 = vld [vmem:[%s148 + $0x1c18] sm:$0xff]
                %413 = vst [vmem:[%s149 + $0x418] sm:$0xff] %v412
                %v414 = vld [vmem:[%s148 + $0x1c20] sm:$0xff]
                %415 = vst [vmem:[%s149 + $0x420] sm:$0xff] %v414
                %v416 = vld [vmem:[%s148 + $0x1c28] sm:$0xff]
                %417 = vst [vmem:[%s149 + $0x428] sm:$0xff] %v416
                %v418 = vld [vmem:[%s148 + $0x1c30] sm:$0xff]
                %419 = vst [vmem:[%s149 + $0x430] sm:$0xff] %v418
                %v420 = vld [vmem:[%s148 + $0x1c38] sm:$0xff]
                %421 = vst [vmem:[%s149 + $0x438] sm:$0xff] %v420
                %v422 = vld [vmem:[%s148 + $0x1dc0] sm:$0xff]
                %423 = vst [vmem:[%s149 + $0x440] sm:$0xff] %v422
                %v424 = vld [vmem:[%s148 + $0x1dc8] sm:$0xff]
                %425 = vst [vmem:[%s149 + $0x448] sm:$0xff] %v424
                %v426 = vld [vmem:[%s148 + $0x1dd0] sm:$0xff]
                %427 = vst [vmem:[%s149 + $0x450] sm:$0xff] %v426
                %v428 = vld [vmem:[%s148 + $0x1dd8] sm:$0xff]
                %429 = vst [vmem:[%s149 + $0x458] sm:$0xff] %v428
                %v430 = vld [vmem:[%s148 + $0x1de0] sm:$0xff]
                %431 = vst [vmem:[%s149 + $0x460] sm:$0xff] %v430
                %v432 = vld [vmem:[%s148 + $0x1de8] sm:$0xff]
                %433 = vst [vmem:[%s149 + $0x468] sm:$0xff] %v432
                %v434 = vld [vmem:[%s148 + $0x1df0] sm:$0xff]
                %435 = vst [vmem:[%s149 + $0x470] sm:$0xff] %v434
                %v436 = vld [vmem:[%s148 + $0x1df8] sm:$0xff]
                %437 = vst [vmem:[%s149 + $0x478] sm:$0xff] %v436
              $region41: #{onion_decoder.6} parent=35 // loop_footer
                %s147 = sadd.s32 1, %s143
              $region42: #{onion_decoder.6} parent=35 // loop_footer_branch
                %142 = sbr.rel target = $region38
              $region43: #{onion_decoder.6} parent=35 // loop_exit
                _
            $region36: #{onion_decoder.6} parent=31 // pred_fallthru
              _
            // Predicated region
            $region44: #{onion_decoder.6} parent=31 // pred_check
              _
            $region45: #{onion_decoder.6} parent=31 // pred_check_branch
              %439 = sbr.rel target = $region47
            $region46: #{onion_decoder.6} parent=31 // pred_region
              _
            $region47: #{onion_decoder.6} parent=31 // pred_fallthru
              _
          $region32: #{onion_decoder.6} parent=27 // pred_fallthru
            _
          %440 = vnop
        $region28: #{onion_decoder.6} parent=23 // pred_fallthru
          _
      $region24: #{onion_decoder.6} parent=5 // pred_fallthru
        _
      %p441 = scmp.le.s32.totalorder 1, %s9
      %p442 = scmp.lt.s32.totalorder %s9, 8
      %p443 = pnand %p441, %p442
      %p444 = pneg %p443
      // Predicated region
      $region48: #{onion_decoder.6} parent=5 // pred_check
        _
      $region49: #{onion_decoder.6} parent=5 // pred_check_branch
        %446 = sbr.rel (%p443) target = $region51
      $region50: #{onion_decoder.6} parent=5 // pred_region
        %s447 = ssub.s32 %s9, 1
        %s448 = sand.u32 %s22, 1
        %s449 = sand.u32 %s22, 1
        %s450 = smul.addr %s449, 1152
        %s451 = scalar_lea.vmem [#allocation2], %s450
        // Predicated region
        $region52: #{onion_decoder.6} parent=50 // pred_check
          %p452 = pneg %p35
        $region53: #{onion_decoder.6} parent=50 // pred_check_branch
          %454 = sbr.rel (%p452) target = $region55
        $region54: #{onion_decoder.6} parent=50 // pred_region
          _
        $region55: #{onion_decoder.6} parent=50 // pred_fallthru
          _
        %s455 = sand.u32 %s22, 1
        %s456 = sand.u32 %s22, 1
        %s457 = smul.addr %s456, 1152
        %s458 = scalar_lea.vmem [#allocation2], %s457
        %p459 = pneg %p35
        %p460 = pneg %p32
        %p461 = pneg %p56
        %p462 = pneg %p53
        %p463 = pneg %p77
        %p464 = pneg %p74
        %p465 = pneg %p103
        %p466 = pneg %p100
        %s467 = smul.u32 8, %s14
        %p468 = scmp.lt.s32.totalorder %s467, 55
        %s469 = scalar_select %p468, %s467, 55
        %s470 = smul.addr %s469, 8
        %s471 = scalar_lea.vmem %s3, %s470
        %s472 = smul.u32 8, %s14
        %s473 = smul.u32 8, %s14
        %p474 = scmp.lt.s32.totalorder %s473, 55
        %s475 = scalar_select %p474, %s473, 55
        %s476 = smul.addr %s475, 8
        %s477 = scalar_lea.vmem %s3, %s476
        %s478 = smul.u32 8, %s14
        %v479 = vld [vmem:[%s1] sm:$0xff]
        %v480 = vld [vmem:[%s1 + $0x8] sm:$0xff]
        %v481 = vld [vmem:[%s451] sm:$0xff]
        %v482 = vld [vmem:[%s451 + $0x8] sm:$0xff]
        %v483 = vld [vmem:[%s451 + $0x10] sm:$0xff]
        %v484 = vld [vmem:[%s451 + $0x18] sm:$0xff]
        %v485 = vld [vmem:[%s451 + $0x20] sm:$0xff]
        %v486 = vld [vmem:[%s451 + $0x28] sm:$0xff]
        %v487 = vld [vmem:[%s451 + $0x30] sm:$0xff]
        %v488 = vld [vmem:[%s451 + $0x38] sm:$0xff]
        %v489 = vld [vmem:[%s451 + $0x40] sm:$0xff]
        %v490 = vld [vmem:[%s451 + $0x48] sm:$0xff]
        %v491 = vld [vmem:[%s451 + $0x50] sm:$0xff]
        %v492 = vld [vmem:[%s451 + $0x58] sm:$0xff]
        %v493 = vld [vmem:[%s451 + $0x60] sm:$0xff]
        %v494 = vld [vmem:[%s451 + $0x68] sm:$0xff]
        %v495 = vld [vmem:[%s451 + $0x70] sm:$0xff]
        %v496 = vld [vmem:[%s451 + $0x78] sm:$0xff]
        %v497 = vld [vmem:[%s451 + $0x80] sm:$0xff]
        %v498 = vld [vmem:[%s451 + $0x88] sm:$0xff]
        %v499 = vld [vmem:[%s451 + $0x90] sm:$0xff]
        %v500 = vld [vmem:[%s451 + $0x98] sm:$0xff]
        %v501 = vld [vmem:[%s451 + $0xa0] sm:$0xff]
        %v502 = vld [vmem:[%s451 + $0xa8] sm:$0xff]
        %v503 = vld [vmem:[%s451 + $0xb0] sm:$0xff]
        %v504 = vld [vmem:[%s451 + $0xb8] sm:$0xff]
        %v505 = vld [vmem:[%s451 + $0xc0] sm:$0xff]
        %v506 = vld [vmem:[%s451 + $0xc8] sm:$0xff]
        %v507 = vld [vmem:[%s451 + $0xd0] sm:$0xff]
        %v508 = vld [vmem:[%s451 + $0xd8] sm:$0xff]
        %v509 = vld [vmem:[%s451 + $0xe0] sm:$0xff]
        %v510 = vld [vmem:[%s451 + $0xe8] sm:$0xff]
        %v511 = vld [vmem:[%s451 + $0xf0] sm:$0xff]
        %v512 = vld [vmem:[%s451 + $0xf8] sm:$0xff]
        %v513 = vld [vmem:[%s451 + $0x100] sm:$0xff]
        %v514 = vld [vmem:[%s451 + $0x108] sm:$0xff]
        %v515 = vld [vmem:[%s451 + $0x110] sm:$0xff]
        %v516 = vld [vmem:[%s451 + $0x118] sm:$0xff]
        %v517 = vld [vmem:[%s451 + $0x120] sm:$0xff]
        %v518 = vld [vmem:[%s451 + $0x128] sm:$0xff]
        %v519 = vld [vmem:[%s451 + $0x130] sm:$0xff]
        %v520 = vld [vmem:[%s451 + $0x138] sm:$0xff]
        %v521 = vld [vmem:[%s451 + $0x140] sm:$0xff]
        %v522 = vld [vmem:[%s451 + $0x148] sm:$0xff]
        %v523 = vld [vmem:[%s451 + $0x150] sm:$0xff]
        %v524 = vld [vmem:[%s451 + $0x158] sm:$0xff]
        %v525 = vld [vmem:[%s451 + $0x160] sm:$0xff]
        %v526 = vld [vmem:[%s451 + $0x168] sm:$0xff]
        %v527 = vld [vmem:[%s451 + $0x170] sm:$0xff]
        %v528 = vld [vmem:[%s451 + $0x178] sm:$0xff]
        %v529 = vld [vmem:[%s451 + $0x180] sm:$0xff]
        %v530 = vld [vmem:[%s451 + $0x188] sm:$0xff]
        %v531 = vld [vmem:[%s451 + $0x190] sm:$0xff]
        %v532 = vld [vmem:[%s451 + $0x198] sm:$0xff]
        %v533 = vld [vmem:[%s451 + $0x1a0] sm:$0xff]
        %v534 = vld [vmem:[%s451 + $0x1a8] sm:$0xff]
        %v535 = vld [vmem:[%s451 + $0x1b0] sm:$0xff]
        %v536 = vld [vmem:[%s451 + $0x1b8] sm:$0xff]
        %v537 = vld [vmem:[%s451 + $0x1c0] sm:$0xff]
        %v538 = vld [vmem:[%s451 + $0x1c8] sm:$0xff]
        %v539 = vld [vmem:[%s451 + $0x1d0] sm:$0xff]
        %v540 = vld [vmem:[%s451 + $0x1d8] sm:$0xff]
        %v541 = vld [vmem:[%s451 + $0x1e0] sm:$0xff]
        %v542 = vld [vmem:[%s451 + $0x1e8] sm:$0xff]
        %v543 = vld [vmem:[%s451 + $0x1f0] sm:$0xff]
        %v544 = vld [vmem:[%s451 + $0x1f8] sm:$0xff]
        %v545 = vld [vmem:[%s451 + $0x200] sm:$0xff]
        %v546 = vld [vmem:[%s451 + $0x208] sm:$0xff]
        %v547 = vld [vmem:[%s451 + $0x210] sm:$0xff]
        %v548 = vld [vmem:[%s451 + $0x218] sm:$0xff]
        %v549 = vld [vmem:[%s451 + $0x220] sm:$0xff]
        %v550 = vld [vmem:[%s451 + $0x228] sm:$0xff]
        %v551 = vld [vmem:[%s451 + $0x230] sm:$0xff]
        %v552 = vld [vmem:[%s451 + $0x238] sm:$0xff]
        %v553 = vld [vmem:[%s451 + $0x240] sm:$0xff]
        %v554 = vld [vmem:[%s451 + $0x248] sm:$0xff]
        %v555 = vld [vmem:[%s451 + $0x250] sm:$0xff]
        %v556 = vld [vmem:[%s451 + $0x258] sm:$0xff]
        %v557 = vld [vmem:[%s451 + $0x260] sm:$0xff]
        %v558 = vld [vmem:[%s451 + $0x268] sm:$0xff]
        %v559 = vld [vmem:[%s451 + $0x270] sm:$0xff]
        %v560 = vld [vmem:[%s451 + $0x278] sm:$0xff]
        %v561 = vld [vmem:[%s451 + $0x280] sm:$0xff]
        %v562 = vld [vmem:[%s451 + $0x288] sm:$0xff]
        %v563 = vld [vmem:[%s451 + $0x290] sm:$0xff]
        %v564 = vld [vmem:[%s451 + $0x298] sm:$0xff]
        %v565 = vld [vmem:[%s451 + $0x2a0] sm:$0xff]
        %v566 = vld [vmem:[%s451 + $0x2a8] sm:$0xff]
        %v567 = vld [vmem:[%s451 + $0x2b0] sm:$0xff]
        %v568 = vld [vmem:[%s451 + $0x2b8] sm:$0xff]
        %v569 = vld [vmem:[%s451 + $0x2c0] sm:$0xff]
        %v570 = vld [vmem:[%s451 + $0x2c8] sm:$0xff]
        %v571 = vld [vmem:[%s451 + $0x2d0] sm:$0xff]
        %v572 = vld [vmem:[%s451 + $0x2d8] sm:$0xff]
        %v573 = vld [vmem:[%s451 + $0x2e0] sm:$0xff]
        %v574 = vld [vmem:[%s451 + $0x2e8] sm:$0xff]
        %v575 = vld [vmem:[%s451 + $0x2f0] sm:$0xff]
        %v576 = vld [vmem:[%s451 + $0x2f8] sm:$0xff]
        %v577 = vld [vmem:[%s451 + $0x300] sm:$0xff]
        %v578 = vld [vmem:[%s451 + $0x308] sm:$0xff]
        %v579 = vld [vmem:[%s451 + $0x310] sm:$0xff]
        %v580 = vld [vmem:[%s451 + $0x318] sm:$0xff]
        %v581 = vld [vmem:[%s451 + $0x320] sm:$0xff]
        %v582 = vld [vmem:[%s451 + $0x328] sm:$0xff]
        %v583 = vld [vmem:[%s451 + $0x330] sm:$0xff]
        %v584 = vld [vmem:[%s451 + $0x338] sm:$0xff]
        %v585 = vld [vmem:[%s451 + $0x340] sm:$0xff]
        %v586 = vld [vmem:[%s451 + $0x348] sm:$0xff]
        %v587 = vld [vmem:[%s451 + $0x350] sm:$0xff]
        %v588 = vld [vmem:[%s451 + $0x358] sm:$0xff]
        %v589 = vld [vmem:[%s451 + $0x360] sm:$0xff]
        %v590 = vld [vmem:[%s451 + $0x368] sm:$0xff]
        %v591 = vld [vmem:[%s451 + $0x370] sm:$0xff]
        %v592 = vld [vmem:[%s451 + $0x378] sm:$0xff]
        %v593 = vld [vmem:[%s451 + $0x380] sm:$0xff]
        %v594 = vld [vmem:[%s451 + $0x388] sm:$0xff]
        %v595 = vld [vmem:[%s451 + $0x390] sm:$0xff]
        %v596 = vld [vmem:[%s451 + $0x398] sm:$0xff]
        %v597 = vld [vmem:[%s451 + $0x3a0] sm:$0xff]
        %v598 = vld [vmem:[%s451 + $0x3a8] sm:$0xff]
        %v599 = vld [vmem:[%s451 + $0x3b0] sm:$0xff]
        %v600 = vld [vmem:[%s451 + $0x3b8] sm:$0xff]
        %v601 = vld [vmem:[%s451 + $0x3c0] sm:$0xff]
        %v602 = vld [vmem:[%s451 + $0x3c8] sm:$0xff]
        %v603 = vld [vmem:[%s451 + $0x3d0] sm:$0xff]
        %v604 = vld [vmem:[%s451 + $0x3d8] sm:$0xff]
        %v605 = vld [vmem:[%s451 + $0x3e0] sm:$0xff]
        %v606 = vld [vmem:[%s451 + $0x3e8] sm:$0xff]
        %v607 = vld [vmem:[%s451 + $0x3f0] sm:$0xff]
        %v608 = vld [vmem:[%s451 + $0x3f8] sm:$0xff]
        %v609 = vld [vmem:[%s451 + $0x400] sm:$0xff]
        %v610 = vld [vmem:[%s451 + $0x408] sm:$0xff]
        %v611 = vld [vmem:[%s451 + $0x410] sm:$0xff]
        %v612 = vld [vmem:[%s451 + $0x418] sm:$0xff]
        %v613 = vld [vmem:[%s451 + $0x420] sm:$0xff]
        %v614 = vld [vmem:[%s451 + $0x428] sm:$0xff]
        %v615 = vld [vmem:[%s451 + $0x430] sm:$0xff]
        %v616 = vld [vmem:[%s451 + $0x438] sm:$0xff]
        %v617 = vld [vmem:[%s451 + $0x440] sm:$0xff]
        %v618 = vld [vmem:[%s451 + $0x448] sm:$0xff]
        %v619 = vld [vmem:[%s451 + $0x450] sm:$0xff]
        %v620 = vld [vmem:[%s451 + $0x458] sm:$0xff]
        %v621 = vld [vmem:[%s451 + $0x460] sm:$0xff]
        %v622 = vld [vmem:[%s451 + $0x468] sm:$0xff]
        %v623 = vld [vmem:[%s451 + $0x470] sm:$0xff]
        %v624 = vld [vmem:[%s451 + $0x478] sm:$0xff]
        %v625 = vld [vmem:[%s2] sm:$0xff]
        %627 = vset.pattern.permute.xlu0 0
        %628 = vperm.xlu0 %627, %v625
        %v629 = vpop.permute.xlu0 %628
        %vm631 = vcmask 130048
        %v633 = vsel %vm631, %v480, 0
        %635 = vmatprep.subr.mxu0 %v602
        %636 = vmatpush1.msra.mxu0 %v601
        %637 = vmatprep.subr.mxu0 %v594
        %638 = vmatpush1.msra.mxu0 %v593
        %639 = vmatprep.subr.mxu0 %v586
        %640 = vmatpush1.msra.mxu0 %v585
        %641 = vmatprep.subr.mxu0 %v578
        %642 = vmatpush1.msra.mxu0 %v577
        %643 = vmatprep.subr.mxu0 %v570
        %644 = vmatpush1.msra.mxu0 %v569
        %645 = vmatprep.subr.mxu0 %v562
        %646 = vmatpush1.msra.mxu0 %v561
        %647 = vmatprep.subr.mxu0 %v554
        %648 = vmatpush1.msra.mxu0 %v553
        %649 = vmatprep.subr.mxu0 %v546
        %650 = vmatpush1.msra.mxu0 %v545
        %651 = vmatprep.subr.mxu0 %v538
        %652 = vmatpush1.msra.mxu0 %v537
        %653 = vmatprep.subr.mxu0 %v530
        %654 = vmatpush1.msra.mxu0 %v529
        %655 = vmatprep.subr.mxu0 %v522
        %656 = vmatpush1.msra.mxu0 %v521
        %657 = vmatprep.subr.mxu0 %v514
        %658 = vmatpush1.msra.mxu0 %v513
        %659 = vmatprep.subr.mxu0 %v506
        %660 = vmatpush1.msra.mxu0 %v505
        %661 = vmatprep.subr.mxu0 %v498
        %662 = vmatpush1.msra.mxu0 %v497
        %663 = vmatprep.subr.mxu0 %v490
        %664 = vmatpush1.msra.mxu0 %v489
        %665 = vmatprep.subr.mxu0 %v482
        %666 = vmatpush1.msra.mxu0 %v481
        %667 = vmatprep.subr.mxu0 0.0
        %668 = vmatpush2.msra.mxu0 0.0
        %669 = vmatprep.subr.mxu0 0.0
        %670 = vmatpush2.msra.mxu0 0.0
        %671 = vmatprep.subr.mxu0 0.0
        %672 = vmatpush2.msra.mxu0 0.0
        %673 = vmatprep.subr.mxu0 0.0
        %674 = vmatpush2.msra.mxu0 0.0
        %675 = vmatprep.subr.mxu0 0.0
        %676 = vmatpush2.msra.mxu0 0.0
        %677 = vmatprep.subr.mxu0 0.0
        %678 = vmatpush2.msra.mxu0 0.0
        %679 = vmatprep.subr.mxu0 0.0
        %680 = vmatpush2.msra.mxu0 0.0
        %681 = vmatprep.subr.mxu0 0.0
        %682 = vmatpush2.msra.mxu0 0.0
        %683 = vmatprep.subr.mxu0 0.0
        %684 = vmatpush2.msra.mxu0 0.0
        %685 = vmatprep.subr.mxu0 0.0
        %686 = vmatpush2.msra.mxu0 0.0
        %687 = vmatprep.subr.mxu0 0.0
        %688 = vmatpush2.msra.mxu0 0.0
        %689 = vmatprep.subr.mxu0 0.0
        %690 = vmatpush2.msra.mxu0 0.0
        %691 = vmatprep.subr.mxu0 0.0
        %692 = vmatpush2.msra.mxu0 0.0
        %693 = vmatprep.subr.mxu0 0.0
        %694 = vmatpush2.msra.mxu0 0.0
        %695 = vmatprep.subr.mxu0 %v618
        %696 = vmatpush2.msra.mxu0 %v617
        %697 = vmatprep.subr.mxu0 %v610
        %698 = vmatpush2.msra.mxu0 %v609
        %699 = vmatprep.mubr.f32.mxu0 %v633
        %700 = vmatmul.mubr.f32.gmra.mxu0 %v479
        %v701 = vpop.f32.mrf.mxu0
        %v702 = vadd.f32 %v629, %v701
        %v703 = vpop.f32.mrf.mxu0
        %v704 = vadd.f32 %v629, %v703
        %705 = vdwg.mxu0
        %706 = vmatprep.subr.mxu0 %v604
        %707 = vmatpush1.msra.mxu0 %v603
        %708 = vmatprep.subr.mxu0 %v596
        %709 = vmatpush1.msra.mxu0 %v595
        %710 = vmatprep.subr.mxu0 %v588
        %711 = vmatpush1.msra.mxu0 %v587
        %712 = vmatprep.subr.mxu0 %v580
        %713 = vmatpush1.msra.mxu0 %v579
        %714 = vmatprep.subr.mxu0 %v572
        %715 = vmatpush1.msra.mxu0 %v571
        %716 = vmatprep.subr.mxu0 %v564
        %717 = vmatpush1.msra.mxu0 %v563
        %718 = vmatprep.subr.mxu0 %v556
        %719 = vmatpush1.msra.mxu0 %v555
        %720 = vmatprep.subr.mxu0 %v548
        %721 = vmatpush1.msra.mxu0 %v547
        %722 = vmatprep.subr.mxu0 %v540
        %723 = vmatpush1.msra.mxu0 %v539
        %724 = vmatprep.subr.mxu0 %v532
        %725 = vmatpush1.msra.mxu0 %v531
        %726 = vmatprep.subr.mxu0 %v524
        %727 = vmatpush1.msra.mxu0 %v523
        %728 = vmatprep.subr.mxu0 %v516
        %729 = vmatpush1.msra.mxu0 %v515
        %730 = vmatprep.subr.mxu0 %v508
        %731 = vmatpush1.msra.mxu0 %v507
        %732 = vmatprep.subr.mxu0 %v500
        %733 = vmatpush1.msra.mxu0 %v499
        %734 = vmatprep.subr.mxu0 %v492
        %735 = vmatpush1.msra.mxu0 %v491
        %736 = vmatprep.subr.mxu0 %v484
        %737 = vmatpush1.msra.mxu0 %v483
        %738 = vmatprep.subr.mxu0 0.0
        %739 = vmatpush2.msra.mxu0 0.0
        %740 = vmatprep.subr.mxu0 0.0
        %741 = vmatpush2.msra.mxu0 0.0
        %742 = vmatprep.subr.mxu0 0.0
        %743 = vmatpush2.msra.mxu0 0.0
        %744 = vmatprep.subr.mxu0 0.0
        %745 = vmatpush2.msra.mxu0 0.0
        %746 = vmatprep.subr.mxu0 0.0
        %747 = vmatpush2.msra.mxu0 0.0
        %748 = vmatprep.subr.mxu0 0.0
        %749 = vmatpush2.msra.mxu0 0.0
        %750 = vmatprep.subr.mxu0 0.0
        %751 = vmatpush2.msra.mxu0 0.0
        %752 = vmatprep.subr.mxu0 0.0
        %753 = vmatpush2.msra.mxu0 0.0
        %754 = vmatprep.subr.mxu0 0.0
        %755 = vmatpush2.msra.mxu0 0.0
        %756 = vmatprep.subr.mxu0 0.0
        %757 = vmatpush2.msra.mxu0 0.0
        %758 = vmatprep.subr.mxu0 0.0
        %759 = vmatpush2.msra.mxu0 0.0
        %760 = vmatprep.subr.mxu0 0.0
        %761 = vmatpush2.msra.mxu0 0.0
        %762 = vmatprep.subr.mxu0 0.0
        %763 = vmatpush2.msra.mxu0 0.0
        %764 = vmatprep.subr.mxu0 0.0
        %765 = vmatpush2.msra.mxu0 0.0
        %766 = vmatprep.subr.mxu0 %v620
        %767 = vmatpush2.msra.mxu0 %v619
        %768 = vmatprep.subr.mxu0 %v612
        %769 = vmatpush2.msra.mxu0 %v611
        %770 = vmatprep.mubr.f32.mxu0 %v633
        %771 = vmatmul.mubr.f32.gmra.mxu0 %v479
        %v772 = vpop.f32.mrf.mxu0
        %v773 = vadd.f32 %v629, %v772
        %v774 = vpop.f32.mrf.mxu0
        %v775 = vadd.f32 %v629, %v774
        %776 = vdwg.mxu0
        %777 = vmatprep.subr.mxu0 %v606
        %778 = vmatpush1.msra.mxu0 %v605
        %779 = vmatprep.subr.mxu0 %v598
        %780 = vmatpush1.msra.mxu0 %v597
        %781 = vmatprep.subr.mxu0 %v590
        %782 = vmatpush1.msra.mxu0 %v589
        %783 = vmatprep.subr.mxu0 %v582
        %784 = vmatpush1.msra.mxu0 %v581
        %785 = vmatprep.subr.mxu0 %v574
        %786 = vmatpush1.msra.mxu0 %v573
        %787 = vmatprep.subr.mxu0 %v566
        %788 = vmatpush1.msra.mxu0 %v565
        %789 = vmatprep.subr.mxu0 %v558
        %790 = vmatpush1.msra.mxu0 %v557
        %791 = vmatprep.subr.mxu0 %v550
        %792 = vmatpush1.msra.mxu0 %v549
        %793 = vmatprep.subr.mxu0 %v542
        %794 = vmatpush1.msra.mxu0 %v541
        %795 = vmatprep.subr.mxu0 %v534
        %796 = vmatpush1.msra.mxu0 %v533
        %797 = vmatprep.subr.mxu0 %v526
        %798 = vmatpush1.msra.mxu0 %v525
        %799 = vmatprep.subr.mxu0 %v518
        %800 = vmatpush1.msra.mxu0 %v517
        %801 = vmatprep.subr.mxu0 %v510
        %802 = vmatpush1.msra.mxu0 %v509
        %803 = vmatprep.subr.mxu0 %v502
        %804 = vmatpush1.msra.mxu0 %v501
        %805 = vmatprep.subr.mxu0 %v494
        %806 = vmatpush1.msra.mxu0 %v493
        %807 = vmatprep.subr.mxu0 %v486
        %808 = vmatpush1.msra.mxu0 %v485
        %809 = vmatprep.subr.mxu0 0.0
        %810 = vmatpush2.msra.mxu0 0.0
        %811 = vmatprep.subr.mxu0 0.0
        %812 = vmatpush2.msra.mxu0 0.0
        %813 = vmatprep.subr.mxu0 0.0
        %814 = vmatpush2.msra.mxu0 0.0
        %815 = vmatprep.subr.mxu0 0.0
        %816 = vmatpush2.msra.mxu0 0.0
        %817 = vmatprep.subr.mxu0 0.0
        %818 = vmatpush2.msra.mxu0 0.0
        %819 = vmatprep.subr.mxu0 0.0
        %820 = vmatpush2.msra.mxu0 0.0
        %821 = vmatprep.subr.mxu0 0.0
        %822 = vmatpush2.msra.mxu0 0.0
        %823 = vmatprep.subr.mxu0 0.0
        %824 = vmatpush2.msra.mxu0 0.0
        %825 = vmatprep.subr.mxu0 0.0
        %826 = vmatpush2.msra.mxu0 0.0
        %827 = vmatprep.subr.mxu0 0.0
        %828 = vmatpush2.msra.mxu0 0.0
        %829 = vmatprep.subr.mxu0 0.0
        %830 = vmatpush2.msra.mxu0 0.0
        %831 = vmatprep.subr.mxu0 0.0
        %832 = vmatpush2.msra.mxu0 0.0
        %833 = vmatprep.subr.mxu0 0.0
        %834 = vmatpush2.msra.mxu0 0.0
        %835 = vmatprep.subr.mxu0 0.0
        %836 = vmatpush2.msra.mxu0 0.0
        %837 = vmatprep.subr.mxu0 %v622
        %838 = vmatpush2.msra.mxu0 %v621
        %839 = vmatprep.subr.mxu0 %v614
        %840 = vmatpush2.msra.mxu0 %v613
        %841 = vmatprep.mubr.f32.mxu0 %v633
        %842 = vmatmul.mubr.f32.gmra.mxu0 %v479
        %v843 = vpop.f32.mrf.mxu0
        %v844 = vadd.f32 %v629, %v843
        %v845 = vpop.f32.mrf.mxu0
        %v846 = vadd.f32 %v629, %v845
        %847 = vdwg.mxu0
        %848 = vmatprep.subr.mxu0 %v608
        %849 = vmatpush1.msra.mxu0 %v607
        %850 = vmatprep.subr.mxu0 %v600
        %851 = vmatpush1.msra.mxu0 %v599
        %852 = vmatprep.subr.mxu0 %v592
        %853 = vmatpush1.msra.mxu0 %v591
        %854 = vmatprep.subr.mxu0 %v584
        %855 = vmatpush1.msra.mxu0 %v583
        %856 = vmatprep.subr.mxu0 %v576
        %857 = vmatpush1.msra.mxu0 %v575
        %858 = vmatprep.subr.mxu0 %v568
        %859 = vmatpush1.msra.mxu0 %v567
        %860 = vmatprep.subr.mxu0 %v560
        %861 = vmatpush1.msra.mxu0 %v559
        %862 = vmatprep.subr.mxu0 %v552
        %863 = vmatpush1.msra.mxu0 %v551
        %864 = vmatprep.subr.mxu0 %v544
        %865 = vmatpush1.msra.mxu0 %v543
        %866 = vmatprep.subr.mxu0 %v536
        %867 = vmatpush1.msra.mxu0 %v535
        %868 = vmatprep.subr.mxu0 %v528
        %869 = vmatpush1.msra.mxu0 %v527
        %870 = vmatprep.subr.mxu0 %v520
        %871 = vmatpush1.msra.mxu0 %v519
        %872 = vmatprep.subr.mxu0 %v512
        %873 = vmatpush1.msra.mxu0 %v511
        %874 = vmatprep.subr.mxu0 %v504
        %875 = vmatpush1.msra.mxu0 %v503
        %876 = vmatprep.subr.mxu0 %v496
        %877 = vmatpush1.msra.mxu0 %v495
        %878 = vmatprep.subr.mxu0 %v488
        %879 = vmatpush1.msra.mxu0 %v487
        %880 = vmatprep.subr.mxu0 0.0
        %881 = vmatpush2.msra.mxu0 0.0
        %882 = vmatprep.subr.mxu0 0.0
        %883 = vmatpush2.msra.mxu0 0.0
        %884 = vmatprep.subr.mxu0 0.0
        %885 = vmatpush2.msra.mxu0 0.0
        %886 = vmatprep.subr.mxu0 0.0
        %887 = vmatpush2.msra.mxu0 0.0
        %888 = vmatprep.subr.mxu0 0.0
        %889 = vmatpush2.msra.mxu0 0.0
        %890 = vmatprep.subr.mxu0 0.0
        %891 = vmatpush2.msra.mxu0 0.0
        %892 = vmatprep.subr.mxu0 0.0
        %893 = vmatpush2.msra.mxu0 0.0
        %894 = vmatprep.subr.mxu0 0.0
        %895 = vmatpush2.msra.mxu0 0.0
        %896 = vmatprep.subr.mxu0 0.0
        %897 = vmatpush2.msra.mxu0 0.0
        %898 = vmatprep.subr.mxu0 0.0
        %899 = vmatpush2.msra.mxu0 0.0
        %900 = vmatprep.subr.mxu0 0.0
        %901 = vmatpush2.msra.mxu0 0.0
        %902 = vmatprep.subr.mxu0 0.0
        %903 = vmatpush2.msra.mxu0 0.0
        %904 = vmatprep.subr.mxu0 0.0
        %905 = vmatpush2.msra.mxu0 0.0
        %906 = vmatprep.subr.mxu0 0.0
        %907 = vmatpush2.msra.mxu0 0.0
        %908 = vmatprep.subr.mxu0 %v624
        %909 = vmatpush2.msra.mxu0 %v623
        %910 = vmatprep.subr.mxu0 %v616
        %911 = vmatpush2.msra.mxu0 %v615
        %912 = vmatprep.mubr.f32.mxu0 %v633
        %913 = vmatmul.mubr.f32.gmra.mxu0 %v479
        %v914 = vpop.f32.mrf.mxu0
        %v915 = vadd.f32 %v629, %v914
        %v916 = vpop.f32.mrf.mxu0
        %v917 = vadd.f32 %v629, %v916
        %918 = vdwg.mxu0
        %v919 = vtanh.pop %v702
        %v920 = vtanh.pop %v704
        %v921 = vtanh.pop %v773
        %v922 = vtanh.pop %v775
        %v923 = vtanh.pop %v844
        %v924 = vtanh.pop %v846
        %v925 = vtanh.pop %v915
        %v926 = vtanh.pop %v917
        %927 = vst [vmem:[%s477] sm:$0xff] %v919
        %928 = vst [vmem:[%s477 + $0x8] sm:$0xff] %v920
        %929 = vst [vmem:[%s477 + $0x10] sm:$0xff] %v921
        %930 = vst [vmem:[%s477 + $0x18] sm:$0xff] %v922
        %931 = vst [vmem:[%s477 + $0x20] sm:$0xff] %v923
        %932 = vst [vmem:[%s477 + $0x28] sm:$0xff] %v924
        %933 = vst [vmem:[%s477 + $0x30] sm:$0xff] %v925
        %934 = vst [vmem:[%s477 + $0x38] sm:$0xff] %v926
        %s935 = smul.u32 8, %s14
        %p936 = scmp.lt.s32.totalorder %s935, 55
        %s937 = scalar_select %p936, %s935, 55
        %s938 = smul.addr %s937, 8
        %s939 = scalar_lea.vmem %s3, %s938
        // Predicated region
        $region56: #{onion_decoder.6} parent=50 // pred_check
          %p940 = pneg %p100
        $region57: #{onion_decoder.6} parent=50 // pred_check_branch
          %942 = sbr.rel (%p940) target = $region59
        $region58: #{onion_decoder.6} parent=50 // pred_region
          %s943 = smul.u32 8, %s14
        $region59: #{onion_decoder.6} parent=50 // pred_fallthru
          _
      $region51: #{onion_decoder.6} parent=5 // pred_fallthru
        _
      %p944 = scmp.le.s32.totalorder 2, %s9
      // Predicated region
      $region60: #{onion_decoder.6} parent=5 // pred_check
        %p945 = pneg %p944
      $region61: #{onion_decoder.6} parent=5 // pred_check_branch
        %947 = sbr.rel (%p945) target = $region63
      $region62: #{onion_decoder.6} parent=5 // pred_region
        %s948 = ssub.s32 %s9, 2
        // Predicated region
        $region64: #{onion_decoder.6} parent=62 // pred_check
          %p949 = pneg %p106
        $region65: #{onion_decoder.6} parent=62 // pred_check_branch
          %951 = sbr.rel (%p949) target = $region67
        $region66: #{onion_decoder.6} parent=62 // pred_region
          %s952 = smul.u32 8, %s15
          %p953 = scmp.lt.s32.totalorder %s952, 55
          %s954 = scalar_select %p953, %s952, 55
          %s955 = smul.addr %s954, 8
          %s956 = scalar_lea.vmem %s3, %s955
        $region67: #{onion_decoder.6} parent=62 // pred_fallthru
          _
      $region63: #{onion_decoder.6} parent=5 // pred_fallthru
        _
    $region6: #{onion_decoder.6} parent=1 // loop_footer
      %s13 = sadd.s32 1, %s9
    $region7: #{onion_decoder.6} parent=1 // loop_footer_branch
      %8 = sbr.rel target = $region3
    $region8: #{onion_decoder.6} parent=1 // loop_exit
      _

// kernel: onion_decoder.7
$region0: #{onion_decoder.7}
  #allocation0 [shape = 'u32[]', space=smem, size = 0x4, offset = 0x4, fixed_abs, tag = 'smem constant byte address 0x4 - core index']
  #allocation1 [shape = 'u32[144,128]{1,0:T(1,128)}', space=vmem, size = 0x12000, scoped, tag = 'internal scratch']
  %s0 = inlined_call_operand.vmem [shape: f32[2,3364], index: 0, kind: input, shape index: {}]
  %s1 = inlined_call_operand.vmem [shape: f32[2,1], index: 1, kind: input, shape index: {}]
  %s2 = inlined_call_operand.vmem [shape: f32[2,1], index: 2, kind: input, shape index: {}]
  %s3 = inlined_call_operand.vmem [shape: f32[2,3364], index: 3, kind: output, shape index: {}]
  %s4 = sld [smem:[#allocation0]]
  $region22: #{onion_decoder.7} parent=0
    _
  %s6 = ssub.s32 1, %s4
  %s7 = scalar_select 0, %s6, %s4
  // Predicated region
  $region2: #{onion_decoder.7} parent=0 // pred_check
    _
  $region3: #{onion_decoder.7} parent=0 // pred_check_branch
    %9 = sbr.rel (0) target = $region5
  $region4: #{onion_decoder.7} parent=0 // pred_region
    _
  $region5: #{onion_decoder.7} parent=0 // pred_fallthru
    _
  // Predicated region
  $region6: #{onion_decoder.7} parent=0 // pred_check
    _
  $region7: #{onion_decoder.7} parent=0 // pred_check_branch
    %11 = sbr.rel (0) target = $region9
  $region8: #{onion_decoder.7} parent=0 // pred_region
    _
  $region9: #{onion_decoder.7} parent=0 // pred_fallthru
    _
  // Predicated region
  $region10: #{onion_decoder.7} parent=0 // pred_check
    _
  $region11: #{onion_decoder.7} parent=0 // pred_check_branch
    %13 = sbr.rel (0) target = $region13
  $region12: #{onion_decoder.7} parent=0 // pred_region
    _
  $region13: #{onion_decoder.7} parent=0 // pred_fallthru
    _
  %v14 = vld [vmem:[%s0] sm:$0xff]
  %v15 = vld [vmem:[%s0 + $0x8] sm:$0xff]
  %v16 = vld [vmem:[%s0 + $0x10] sm:$0xff]
  %v17 = vld [vmem:[%s0 + $0x18] sm:$0xff]
  %v18 = vld [vmem:[%s0 + $0x20] sm:$0xff]
  %v19 = vld [vmem:[%s0 + $0x28] sm:$0xff]
  %v20 = vld [vmem:[%s0 + $0x30] sm:$0x3f]
  %v28 = vcombine.high %v14, %v14
  %v30 = vunpack.c.l.s4 1983009808
  %v31 = vunpack.c.0.s8 %v30
  %v32 = vlaneseq
  %v33 = vshrl.u32 %v32, 7
  %v34 = vsub.s32 %v31, %v33
  %v35 = vrot.slane %v14, %v34
  %v37 = vunpack.c.l.s4 1983009808
  %v38 = vunpack.c.0.s8 %v37
  %v39 = vlaneseq
  %v40 = vshrl.u32 %v39, 7
  %v41 = vsub.s32 %v38, %v40
  %v42 = vrot.slane %v28, %v41
  %v43 = vcombine.high %v35, %v35
  %v44 = vcombine.high %v42, %v42
  %v45 = vcombine.high %v15, %v15
  %v47 = vunpack.c.l.s4 1983009808
  %v48 = vunpack.c.0.s8 %v47
  %v49 = vlaneseq
  %v50 = vshrl.u32 %v49, 7
  %v51 = vsub.s32 %v48, %v50
  %v52 = vrot.slane %v15, %v51
  %v54 = vunpack.c.l.s4 1983009808
  %v55 = vunpack.c.0.s8 %v54
  %v56 = vlaneseq
  %v57 = vshrl.u32 %v56, 7
  %v58 = vsub.s32 %v55, %v57
  %v59 = vrot.slane %v45, %v58
  %v60 = vcombine.high %v52, %v52
  %v61 = vcombine.high %v59, %v59
  %v62 = vcombine.high %v16, %v16
  %v64 = vunpack.c.l.s4 1983009808
  %v65 = vunpack.c.0.s8 %v64
  %v66 = vlaneseq
  %v67 = vshrl.u32 %v66, 7
  %v68 = vsub.s32 %v65, %v67
  %v69 = vrot.slane %v16, %v68
  %v71 = vunpack.c.l.s4 1983009808
  %v72 = vunpack.c.0.s8 %v71
  %v73 = vlaneseq
  %v74 = vshrl.u32 %v73, 7
  %v75 = vsub.s32 %v72, %v74
  %v76 = vrot.slane %v62, %v75
  %v77 = vcombine.high %v69, %v69
  %v78 = vcombine.high %v76, %v76
  %v79 = vcombine.high %v17, %v17
  %v81 = vunpack.c.l.s4 1983009808
  %v82 = vunpack.c.0.s8 %v81
  %v83 = vlaneseq
  %v84 = vshrl.u32 %v83, 7
  %v85 = vsub.s32 %v82, %v84
  %v86 = vrot.slane %v17, %v85
  %v88 = vunpack.c.l.s4 1983009808
  %v89 = vunpack.c.0.s8 %v88
  %v90 = vlaneseq
  %v91 = vshrl.u32 %v90, 7
  %v92 = vsub.s32 %v89, %v91
  %v93 = vrot.slane %v79, %v92
  %v94 = vcombine.high %v86, %v86
  %v95 = vcombine.high %v93, %v93
  %v96 = vcombine.high %v18, %v18
  %v98 = vunpack.c.l.s4 1983009808
  %v99 = vunpack.c.0.s8 %v98
  %v100 = vlaneseq
  %v101 = vshrl.u32 %v100, 7
  %v102 = vsub.s32 %v99, %v101
  %v103 = vrot.slane %v18, %v102
  %v105 = vunpack.c.l.s4 1983009808
  %v106 = vunpack.c.0.s8 %v105
  %v107 = vlaneseq
  %v108 = vshrl.u32 %v107, 7
  %v109 = vsub.s32 %v106, %v108
  %v110 = vrot.slane %v96, %v109
  %v111 = vcombine.high %v103, %v103
  %v112 = vcombine.high %v110, %v110
  %v113 = vcombine.high %v19, %v19
  %v115 = vunpack.c.l.s4 1983009808
  %v116 = vunpack.c.0.s8 %v115
  %v117 = vlaneseq
  %v118 = vshrl.u32 %v117, 7
  %v119 = vsub.s32 %v116, %v118
  %v120 = vrot.slane %v19, %v119
  %v122 = vunpack.c.l.s4 1983009808
  %v123 = vunpack.c.0.s8 %v122
  %v124 = vlaneseq
  %v125 = vshrl.u32 %v124, 7
  %v126 = vsub.s32 %v123, %v125
  %v127 = vrot.slane %v113, %v126
  %v128 = vcombine.high %v120, %v120
  %v129 = vcombine.high %v127, %v127
  %v130 = vcombine.high %v20, %v20
  %v132 = vunpack.c.l.s4 1983009808
  %v133 = vunpack.c.0.s8 %v132
  %v134 = vlaneseq
  %v135 = vshrl.u32 %v134, 7
  %v136 = vsub.s32 %v133, %v135
  %v137 = vrot.slane %v20, %v136
  %v139 = vunpack.c.l.s4 1983009808
  %v140 = vunpack.c.0.s8 %v139
  %v141 = vlaneseq
  %v142 = vshrl.u32 %v141, 7
  %v143 = vsub.s32 %v140, %v142
  %v144 = vrot.slane %v130, %v143
  %v145 = vcombine.high %v137, %v137
  %vm173 = vcmask 1041408
  %v174 = vsel %vm173, %v35, 0.0
  %v175 = vsel %vm173, %v43, 0.0
  %v176 = vadd.f32 %v174, %v175
  %v177 = vsel %vm173, %v42, 0.0
  %v178 = vadd.f32 %v176, %v177
  %v179 = vsel %vm173, %v44, 0.0
  %v180 = vadd.f32 %v178, %v179
  %v181 = vsel %vm173, %v52, 0.0
  %v182 = vadd.f32 %v180, %v181
  %v183 = vsel %vm173, %v60, 0.0
  %v184 = vadd.f32 %v182, %v183
  %v185 = vsel %vm173, %v59, 0.0
  %v186 = vadd.f32 %v184, %v185
  %v187 = vsel %vm173, %v61, 0.0
  %v188 = vadd.f32 %v186, %v187
  %v189 = vsel %vm173, %v69, 0.0
  %v190 = vadd.f32 %v188, %v189
  %v191 = vsel %vm173, %v77, 0.0
  %v192 = vadd.f32 %v190, %v191
  %v193 = vsel %vm173, %v76, 0.0
  %v194 = vadd.f32 %v192, %v193
  %v195 = vsel %vm173, %v78, 0.0
  %v196 = vadd.f32 %v194, %v195
  %v197 = vsel %vm173, %v86, 0.0
  %v198 = vadd.f32 %v196, %v197
  %v199 = vsel %vm173, %v94, 0.0
  %v200 = vadd.f32 %v198, %v199
  %v201 = vsel %vm173, %v93, 0.0
  %v202 = vadd.f32 %v200, %v201
  %v203 = vsel %vm173, %v95, 0.0
  %v204 = vadd.f32 %v202, %v203
  %v205 = vsel %vm173, %v103, 0.0
  %v206 = vadd.f32 %v204, %v205
  %v207 = vsel %vm173, %v111, 0.0
  %v208 = vadd.f32 %v206, %v207
  %v209 = vsel %vm173, %v110, 0.0
  %v210 = vadd.f32 %v208, %v209
  %v211 = vsel %vm173, %v112, 0.0
  %v212 = vadd.f32 %v210, %v211
  %v213 = vsel %vm173, %v120, 0.0
  %v214 = vadd.f32 %v212, %v213
  %v215 = vsel %vm173, %v128, 0.0
  %v216 = vadd.f32 %v214, %v215
  %v217 = vsel %vm173, %v127, 0.0
  %v218 = vadd.f32 %v216, %v217
  %v219 = vsel %vm173, %v129, 0.0
  %v220 = vadd.f32 %v218, %v219
  %v221 = vsel %vm173, %v137, 0.0
  %v222 = vadd.f32 %v220, %v221
  %v223 = vsel %vm173, %v145, 0.0
  %v224 = vadd.f32 %v222, %v223
  %vm225 = vcmask 287744
  %v226 = vsel %vm225, %v144, 0.0
  %v227 = vadd.f32 %v224, %v226
  %228 = vadd.xlane.f32.xlu0 %v227
  %v229 = vpop.xlane.xlu0 %228
  %v230 = vrcp.pop 3364.0
  %v231 = vmul.f32 %v229, %v230
  %v234 = vunpack.c.l.s4 269488144
  %v235 = vunpack.c.0.s8 %v234
  %v236 = vlaneseq
  %v237 = vshrl.u32 %v236, 7
  %v238 = vsub.s32 %v235, %v237
  %v239 = vrot.slane %v231, %v238
  %v241 = vsub.f32 %v14, %v239
  %v242 = vsub.f32 %v15, %v239
  %v243 = vsub.f32 %v16, %v239
  %v244 = vsub.f32 %v17, %v239
  %v245 = vsub.f32 %v18, %v239
  %v246 = vsub.f32 %v19, %v239
  %v247 = vsub.f32 %v20, %v239
  %v248 = vmul.f32 %v241, %v241
  %v249 = vmul.f32 %v242, %v242
  %v250 = vmul.f32 %v243, %v243
  %v251 = vmul.f32 %v244, %v244
  %v252 = vmul.f32 %v245, %v245
  %v253 = vmul.f32 %v246, %v246
  %v254 = vmul.f32 %v247, %v247
  %v262 = vcombine.high %v248, %v248
  %v264 = vunpack.c.l.s4 1983009808
  %v265 = vunpack.c.0.s8 %v264
  %v266 = vlaneseq
  %v267 = vshrl.u32 %v266, 7
  %v268 = vsub.s32 %v265, %v267
  %v269 = vrot.slane %v248, %v268
  %v271 = vunpack.c.l.s4 1983009808
  %v272 = vunpack.c.0.s8 %v271
  %v273 = vlaneseq
  %v274 = vshrl.u32 %v273, 7
  %v275 = vsub.s32 %v272, %v274
  %v276 = vrot.slane %v262, %v275
  %v277 = vcombine.high %v269, %v269
  %v278 = vcombine.high %v276, %v276
  %v279 = vcombine.high %v249, %v249
  %v281 = vunpack.c.l.s4 1983009808
  %v282 = vunpack.c.0.s8 %v281
  %v283 = vlaneseq
  %v284 = vshrl.u32 %v283, 7
  %v285 = vsub.s32 %v282, %v284
  %v286 = vrot.slane %v249, %v285
  %v288 = vunpack.c.l.s4 1983009808
  %v289 = vunpack.c.0.s8 %v288
  %v290 = vlaneseq
  %v291 = vshrl.u32 %v290, 7
  %v292 = vsub.s32 %v289, %v291
  %v293 = vrot.slane %v279, %v292
  %v294 = vcombine.high %v286, %v286
  %v295 = vcombine.high %v293, %v293
  %v296 = vcombine.high %v250, %v250
  %v298 = vunpack.c.l.s4 1983009808
  %v299 = vunpack.c.0.s8 %v298
  %v300 = vlaneseq
  %v301 = vshrl.u32 %v300, 7
  %v302 = vsub.s32 %v299, %v301
  %v303 = vrot.slane %v250, %v302
  %v305 = vunpack.c.l.s4 1983009808
  %v306 = vunpack.c.0.s8 %v305
  %v307 = vlaneseq
  %v308 = vshrl.u32 %v307, 7
  %v309 = vsub.s32 %v306, %v308
  %v310 = vrot.slane %v296, %v309
  %v311 = vcombine.high %v303, %v303
  %v312 = vcombine.high %v310, %v310
  %v313 = vcombine.high %v251, %v251
  %v315 = vunpack.c.l.s4 1983009808
  %v316 = vunpack.c.0.s8 %v315
  %v317 = vlaneseq
  %v318 = vshrl.u32 %v317, 7
  %v319 = vsub.s32 %v316, %v318
  %v320 = vrot.slane %v251, %v319
  %v322 = vunpack.c.l.s4 1983009808
  %v323 = vunpack.c.0.s8 %v322
  %v324 = vlaneseq
  %v325 = vshrl.u32 %v324, 7
  %v326 = vsub.s32 %v323, %v325
  %v327 = vrot.slane %v313, %v326
  %v328 = vcombine.high %v320, %v320
  %v329 = vcombine.high %v327, %v327
  %v330 = vcombine.high %v252, %v252
  %v332 = vunpack.c.l.s4 1983009808
  %v333 = vunpack.c.0.s8 %v332
  %v334 = vlaneseq
  %v335 = vshrl.u32 %v334, 7
  %v336 = vsub.s32 %v333, %v335
  %v337 = vrot.slane %v252, %v336
  %v339 = vunpack.c.l.s4 1983009808
  %v340 = vunpack.c.0.s8 %v339
  %v341 = vlaneseq
  %v342 = vshrl.u32 %v341, 7
  %v343 = vsub.s32 %v340, %v342
  %v344 = vrot.slane %v330, %v343
  %v345 = vcombine.high %v337, %v337
  %v346 = vcombine.high %v344, %v344
  %v347 = vcombine.high %v253, %v253
  %v349 = vunpack.c.l.s4 1983009808
  %v350 = vunpack.c.0.s8 %v349
  %v351 = vlaneseq
  %v352 = vshrl.u32 %v351, 7
  %v353 = vsub.s32 %v350, %v352
  %v354 = vrot.slane %v253, %v353
  %v356 = vunpack.c.l.s4 1983009808
  %v357 = vunpack.c.0.s8 %v356
  %v358 = vlaneseq
  %v359 = vshrl.u32 %v358, 7
  %v360 = vsub.s32 %v357, %v359
  %v361 = vrot.slane %v347, %v360
  %v362 = vcombine.high %v354, %v354
  %v363 = vcombine.high %v361, %v361
  %v364 = vcombine.high %v254, %v254
  %v366 = vunpack.c.l.s4 1983009808
  %v367 = vunpack.c.0.s8 %v366
  %v368 = vlaneseq
  %v369 = vshrl.u32 %v368, 7
  %v370 = vsub.s32 %v367, %v369
  %v371 = vrot.slane %v254, %v370
  %v373 = vunpack.c.l.s4 1983009808
  %v374 = vunpack.c.0.s8 %v373
  %v375 = vlaneseq
  %v376 = vshrl.u32 %v375, 7
  %v377 = vsub.s32 %v374, %v376
  %v378 = vrot.slane %v364, %v377
  %v379 = vcombine.high %v371, %v371
  %v407 = vsel %vm173, %v269, 0.0
  %v408 = vsel %vm173, %v277, 0.0
  %v409 = vadd.f32 %v407, %v408
  %v410 = vsel %vm173, %v276, 0.0
  %v411 = vadd.f32 %v409, %v410
  %v412 = vsel %vm173, %v278, 0.0
  %v413 = vadd.f32 %v411, %v412
  %v414 = vsel %vm173, %v286, 0.0
  %v415 = vadd.f32 %v413, %v414
  %v416 = vsel %vm173, %v294, 0.0
  %v417 = vadd.f32 %v415, %v416
  %v418 = vsel %vm173, %v293, 0.0
  %v419 = vadd.f32 %v417, %v418
  %v420 = vsel %vm173, %v295, 0.0
  %v421 = vadd.f32 %v419, %v420
  %v422 = vsel %vm173, %v303, 0.0
  %v423 = vadd.f32 %v421, %v422
  %v424 = vsel %vm173, %v311, 0.0
  %v425 = vadd.f32 %v423, %v424
  %v426 = vsel %vm173, %v310, 0.0
  %v427 = vadd.f32 %v425, %v426
  %v428 = vsel %vm173, %v312, 0.0
  %v429 = vadd.f32 %v427, %v428
  %v430 = vsel %vm173, %v320, 0.0
  %v431 = vadd.f32 %v429, %v430
  %v432 = vsel %vm173, %v328, 0.0
  %v433 = vadd.f32 %v431, %v432
  %v434 = vsel %vm173, %v327, 0.0
  %v435 = vadd.f32 %v433, %v434
  %v436 = vsel %vm173, %v329, 0.0
  %v437 = vadd.f32 %v435, %v436
  %v438 = vsel %vm173, %v337, 0.0
  %v439 = vadd.f32 %v437, %v438
  %v440 = vsel %vm173, %v345, 0.0
  %v441 = vadd.f32 %v439, %v440
  %v442 = vsel %vm173, %v344, 0.0
  %v443 = vadd.f32 %v441, %v442
  %v444 = vsel %vm173, %v346, 0.0
  %v445 = vadd.f32 %v443, %v444
  %v446 = vsel %vm173, %v354, 0.0
  %v447 = vadd.f32 %v445, %v446
  %v448 = vsel %vm173, %v362, 0.0
  %v449 = vadd.f32 %v447, %v448
  %v450 = vsel %vm173, %v361, 0.0
  %v451 = vadd.f32 %v449, %v450
  %v452 = vsel %vm173, %v363, 0.0
  %v453 = vadd.f32 %v451, %v452
  %v454 = vsel %vm173, %v371, 0.0
  %v455 = vadd.f32 %v453, %v454
  %v456 = vsel %vm173, %v379, 0.0
  %v457 = vadd.f32 %v455, %v456
  %v458 = vsel %vm225, %v378, 0.0
  %v459 = vadd.f32 %v457, %v458
  %460 = vadd.xlane.f32.xlu0 %v459
  %v461 = vpop.xlane.xlu0 %460
  %v462 = vmul.f32 %v461, %v230
  %v463 = vadd.f32 %v462, 1.0
  %v464 = vrsqrt.pop %v463
  %v467 = vunpack.c.l.s4 269488144
  %v468 = vunpack.c.0.s8 %v467
  %v469 = vlaneseq
  %v470 = vshrl.u32 %v469, 7
  %v471 = vsub.s32 %v468, %v470
  %v472 = vrot.slane %v464, %v471
  %v474 = vmul.f32 %v241, %v472
  %v475 = vmul.f32 %v242, %v472
  %v476 = vmul.f32 %v243, %v472
  %v477 = vmul.f32 %v244, %v472
  %v478 = vmul.f32 %v245, %v472
  %v479 = vmul.f32 %v246, %v472
  %v480 = vmul.f32 %v247, %v472
  %v481 = vld [vmem:[%s1] sm:$0x3]
  %483 = vset.pattern.permute.xlu0 0
  %484 = vperm.xlu0 %483, %v481
  %v485 = vpop.permute.xlu0 %484
  %v487 = vunpack.c.l.s4 269488144
  %v488 = vunpack.c.0.s8 %v487
  %v489 = vlaneseq
  %v490 = vshrl.u32 %v489, 7
  %v491 = vsub.s32 %v488, %v490
  %v492 = vrot.slane %v485, %v491
  %v494 = vmul.f32 %v474, %v492
  %v495 = vmul.f32 %v475, %v492
  %v496 = vmul.f32 %v476, %v492
  %v497 = vmul.f32 %v477, %v492
  %v498 = vmul.f32 %v478, %v492
  %v499 = vmul.f32 %v479, %v492
  %v500 = vmul.f32 %v480, %v492
  %v501 = vld [vmem:[%s2] sm:$0x3]
  %503 = vset.pattern.permute.xlu0 0
  %504 = vperm.xlu0 %503, %v501
  %v505 = vpop.permute.xlu0 %504
  %v507 = vunpack.c.l.s4 269488144
  %v508 = vunpack.c.0.s8 %v507
  %v509 = vlaneseq
  %v510 = vshrl.u32 %v509, 7
  %v511 = vsub.s32 %v508, %v510
  %v512 = vrot.slane %v505, %v511
  %v514 = vadd.f32 %v494, %v512
  %v515 = vadd.f32 %v495, %v512
  %v516 = vadd.f32 %v496, %v512
  %v517 = vadd.f32 %v497, %v512
  %v518 = vadd.f32 %v498, %v512
  %v519 = vadd.f32 %v499, %v512
  %v520 = vadd.f32 %v500, %v512
  %521 = vst [vmem:[%s3] sm:$0xff] %v514
  %522 = vst [vmem:[%s3 + $0x8] sm:$0xff] %v515
  %523 = vst [vmem:[%s3 + $0x10] sm:$0xff] %v516
  %524 = vst [vmem:[%s3 + $0x18] sm:$0xff] %v517
  %525 = vst [vmem:[%s3 + $0x20] sm:$0xff] %v518
  %526 = vst [vmem:[%s3 + $0x28] sm:$0xff] %v519
  %vm527 = vcmask 1043458
  %vm528 = vmor %vm527, %vm173
  %vm529 = vcmask 291844
  %vm530 = vmor %vm529, %vm528
  %531 = vst.msk [vmem:[%s3 + $0x30] sm:$0x3f] %vm530, %v520
  // Predicated region
  $region14: #{onion_decoder.7} parent=0 // pred_check
    _
  $region15: #{onion_decoder.7} parent=0 // pred_check_branch
    %533 = sbr.rel (0) target = $region17
  $region16: #{onion_decoder.7} parent=0 // pred_region
    _
  $region17: #{onion_decoder.7} parent=0 // pred_fallthru
    _
  // Predicated region
  $region18: #{onion_decoder.7} parent=0 // pred_check
    _
  $region19: #{onion_decoder.7} parent=0 // pred_check_branch
    %535 = sbr.rel (0) target = $region21
  $region20: #{onion_decoder.7} parent=0 // pred_region
    _
  $region21: #{onion_decoder.7} parent=0 // pred_fallthru
    _

</llo_original>
